<compile_context>
chip_gen: v6e
topology: v6e:2x2x1
jax: 0.10.0
libtpu: 0.0.40
codegen_flags: <defaults>
</compile_context>

<pallas_src>
import functools

import jax
import jax.numpy as jnp
from jax import lax
from jax.experimental import pallas as pl
from jax.experimental.pallas import tpu as pltpu


def _conv_out(size, k, stride, dilation):
    return (size - dilation * (k - 1) - 1) // stride + 1


def _vmem_limit_bytes():
    # v5e/v6e: 128 MiB physical VMEM per core, v7x: 64 MiB.  Use ~75% of
    # physical (capped at 96 MiB) so Mosaic keeps headroom for its own scratch.
    try:
        cap = int(pltpu.get_tpu_info().vmem_capacity_bytes)
    except Exception:
        cap = 64 << 20                      # conservative if the query is unavailable
    return int(min(cap * 3 // 4, 96 << 20))


def _pick_batch_tile(batch, c, h, w, kh, vmem_limit):
    """Largest batch tile whose double-buffered input + kernel temporaries fit VMEM."""
    if batch < 16:
        return batch                        # single block; (B, 2) out block stays legal
    # double-buffered f32 input (2*C planes) + live f32 temporaries inside the
    # kernel (kh accumulators + xc + rolled copy + term + conv/y  ~= kh + 5 planes)
    per_sample = (2 * c + kh + 5) * h * w * 4
    tb = max(8, int(vmem_limit * 0.6) // per_sample)
    tb = min(tb, batch // 2)                # >= 2 grid steps: keeps both v7x TCs busy
    tb = max(8, (tb // 8) * 8)              # 8-sublane aligned so the (tb, 2) out block tiles
    for cand in range(tb, 7, -8):           # prefer a tile that divides B (no padded step)
        if batch % cand == 0:
            return cand
    return tb                               # non-dividing tile is still correct (masked writes)


def _shift_lanes(x, amount, use_roll):
    """Circular left shift along the last (lane) axis: out[..., w] = x[..., (w + amount) % W]."""
    width = x.shape[-1]
    s = amount % width
    if s == 0:
        return x
    if use_roll:
        # XLU lane rotation (jnp.roll semantics: rotate right), left shift by s
        # == rotate right by width - s.
        return pltpu.roll(x, shift=width - s, axis=x.ndim - 1)
    # Fallback: identical access pattern via two lane slices + concat.
    return jnp.concatenate([x[..., s:], x[..., :s]], axis=-1)


def classifier_kernel(x_ref, wfc_ref, wconv_ref, bconv_ref, bfc_ref, out_ref,
                      *, kh, kw, c_in, dilation, h_eff, use_roll):
    """Conv2d(out=1) + ReLU + flatten + Linear(., 2) for one batch tile.

    x_ref     : (TB, C, H, W)   f32 VMEM block
    wfc_ref   : (2, H_eff, W)   f32 VMEM   fc weight, zero outside the valid
                                (strided) output positions -> folds the W crop
                                and stride subsampling into the fc reduction
    wconv_ref : (C*KH*KW,)      f32 SMEM   conv weight, order [c, i, j]
    bconv_ref : (1,)            f32 SMEM
    bfc_ref   : (2,)            f32 SMEM
    out_ref   : (TB, 2)         f32 VMEM block
    """
    tb, _, H, W = x_ref.shape

    # accs[i][b, h, w] = sum_{c, j} x[b, c, h, (w + j*dil) % W] * wconv[c, i, j]
    # -> one lane shift per (c, j), reused across all kh row taps.
    accs = [None] * kh
    for c in range(c_in):
        xc = x_ref[:, c]                                   # (TB, H, W)
        for j in range(kw):
            xcj = _shift_lanes(xc, j * dilation, use_roll)
            for i in range(kh):
                term = xcj * wconv_ref[c * kh * kw + i * kw + j]   # SMEM scalar FMA
                accs[i] = term if accs[i] is None else accs[i] + term

    # Combine the kh row-offset accumulators once (kh-1 sublane-offset slices in
    # total, instead of one materialized shifted copy per tap).
    conv = lax.slice(accs[0], (0, 0, 0), (tb, h_eff, W))
    for i in range(1, kh):
        off = i * dilation
        conv = conv + lax.slice(accs[i], (0, off, 0), (tb, off + h_eff, W))

    y = jnp.maximum(conv + bconv_ref[0], 0.0)              # ReLU(conv + bias)

    # fc: wfc is zero at lane-wrap / border / non-strided positions, so garbage
    # there contributes nothing.
    # TODO(synk): fold both reductions into one traversal of y (saves ~one vld pass).
    l0 = jnp.sum(jnp.sum(y * wfc_ref[0], axis=2), axis=1, keepdims=True) + bfc_ref[0]
    l1 = jnp.sum(jnp.sum(y * wfc_ref[1], axis=2), axis=1, keepdims=True) + bfc_ref[1]
    out_ref[...] = jnp.concatenate([l0, l1], axis=1)       # (TB, 2)


class ClassifierNetworkPallas:
    """JAX/Pallas port of the PyTorch ClassifierNetwork."""

    def __init__(self, input_channels, input_height, input_width,
                 conv_height, conv_width, stride=1, dilation=1,
                 key=jax.random.PRNGKey(42)):
        self.c = input_channels
        self.h_in, self.w_in = input_height, input_width
        self.kh, self.kw = conv_height, conv_width
        self.stride, self.dilation = stride, dilation
        self.h_out = _conv_out(input_height, conv_height, stride, dilation)
        self.w_out = _conv_out(input_width, conv_width, stride, dilation)
        self.h_eff = (self.h_out - 1) * stride + 1         # rows of the stride-1 conv we keep
        self.w_eff = (self.w_out - 1) * stride + 1
        self.flatten_size = self.h_out * self.w_out * 1

        k1, k2, k3, k4 = jax.random.split(key, 4)
        fan_in_conv = input_channels * conv_height * conv_width
        bc = 1.0 / (fan_in_conv ** 0.5)
        # Conv2d(in=C, out=1, kernel=(KH,KW)) -> weight (1, C, KH, KW), bias (1,)
        self.conv_w = jax.random.uniform(
            k1, (1, input_channels, conv_height, conv_width), jnp.float32, -bc, bc)
        self.conv_b = jax.random.uniform(k2, (1,), jnp.float32, -bc, bc)
        bf = 1.0 / (self.flatten_size ** 0.5)
        # Linear(flatten_size, 2) -> weight (2, F), bias (2,)
        self.fc_w = jax.random.uniform(k3, (2, self.flatten_size), jnp.float32, -bf, bf)
        self.fc_b = jax.random.uniform(k4, (2,), jnp.float32, -bf, bf)

        self._use_roll = None                               # resolved on first forward
        self._call_cache = {}

    # ---- host-side parameter plumbing -------------------------------------
    def _padded_fc_weight(self, w_in):
        """fc weight scattered onto the (H_eff, W) conv footprint; zero elsewhere."""
        w2 = self.fc_w.reshape(2, self.h_out, self.w_out)
        pad = jnp.zeros((2, self.h_eff, w_in), jnp.float32)
        return pad.at[:, 0:self.h_eff:self.stride, 0:self.w_eff:self.stride].set(w2)

    def _build_call(self, batch, c, h, w, tb, use_roll, vmem_limit):
        key = (batch, c, h, w, tb, use_roll)
        fn = self._call_cache.get(key)
        if fn is not None:
            return fn
        kern = functools.partial(classifier_kernel, kh=self.kh, kw=self.kw,
                                 c_in=c, dilation=self.dilation,
                                 h_eff=self.h_eff, use_roll=use_roll)
        fn = pl.pallas_call(
            kern,
            grid=(pl.cdiv(batch, tb),),
            in_specs=[
                pl.BlockSpec((tb, c, h, w), lambda i: (i, 0, 0, 0)),
                pl.BlockSpec((2, self.h_eff, w), lambda i: (0, 0, 0)),
                pl.BlockSpec(memory_space=pltpu.MemorySpace.SMEM),   # conv weight
                pl.BlockSpec(memory_space=pltpu.MemorySpace.SMEM),   # conv bias
                pl.BlockSpec(memory_space=pltpu.MemorySpace.SMEM),   # fc bias
            ],
            out_specs=pl.BlockSpec((tb, 2), lambda i: (i, 0)),
            out_shape=jax.ShapeDtypeStruct((batch, 2), jnp.float32),
            compiler_params=pltpu.CompilerParams(
                dimension_semantics=("parallel",),
                vmem_limit_bytes=vmem_limit),
        )
        self._call_cache[key] = fn
        return fn

    def _forward(self, x):
        batch, c, h, w = x.shape
        vmem_limit = _vmem_limit_bytes()
        tb = _pick_batch_tile(batch, c, h, w, self.kh, vmem_limit)
        # TODO(synk): optionally DMA x as bfloat16 (halves HBM traffic, doubles TB
        # headroom); kept f32 here so the f32 reference check stays tight.
        # TODO(synk): for stride > 1, pre-split x into stride phases on the host so
        # in-kernel accesses stay unit-stride (current path is correct but computes
        # the stride-1 conv and subsamples via the zero-padded fc weights).
        wconv = self.conv_w[0].reshape(-1)                  # (C*KH*KW,), order [c, i, j]
        wfc = self._padded_fc_weight(w)                     # (2, H_eff, W)
        args = (x, wfc, wconv, self.conv_b, self.fc_b)

        if self._use_roll is None:
            # One-time dispatch: prefer the XLU roll path; fall back to the
            # concat-based lane shift if roll fails to lower or to validate.
            try:
                out = self._build_call(batch, c, h, w, tb, True, vmem_limit)(*args)
                out.block_until_ready()
                ok = bool(jnp.allclose(out, self.reference(x), rtol=1e-3, atol=1e-3))
            except Exception:
                ok = False
            self._use_roll = ok
            if ok:
                return out
        return self._build_call(batch, c, h, w, tb, self._use_roll, vmem_limit)(*args)

    # ---- public API ---------------------------------------------------------
    def __call__(self, x, metadata):
        if x.ndim == 2:
            # torch module hard-codes reshape(B, 3, 128, 128); use the constructor
            # dims so other configurations don't silently mis-shape.
            x = x.reshape(x.shape[0], self.c, self.h_in, self.w_in)
        x = x.astype(jnp.float32)
        assert x.shape[1:] == (self.c, self.h_in, self.w_in)
        linear_x = self._forward(x)
        # x_copy = x_reshape.clone(): JAX arrays are immutable, so the input array
        # itself is the clone (zero extra HBM traffic).
        # (original module also does: print(f'classifier output: linear_x'))
        return ((linear_x, metadata), (x, metadata), (None, None))

    # ---- plain-JAX reference for correctness checking -----------------------
    def reference(self, x):
        conv = lax.conv_general_dilated(
            x.astype(jnp.float32), self.conv_w,
            window_strides=(self.stride, self.stride),
            padding="VALID",
            rhs_dilation=(self.dilation, self.dilation),
            dimension_numbers=("NCHW", "OIHW", "NCHW"),
            precision=lax.Precision.HIGHEST)
        conv = conv + self.conv_b.reshape(1, 1, 1, 1)
        rel = jnp.maximum(conv, 0.0)
        flat = rel.reshape(x.shape[0], -1)
        return jnp.dot(flat, self.fc_w.T, precision=lax.Precision.HIGHEST) + self.fc_b


if __name__ == "__main__":
    # Small but lane-friendly shapes: H=16 (sublanes), W=128 (one full lane tile).
    B, C, H, W = 2, 3, 16, 128
    KH = KW = 3

    key = jax.random.PRNGKey(0)
    kx, kp = jax.random.split(key)
    x = jax.random.normal(kx, (B, C, H, W), dtype=jnp.float32)
    metadata = {"sample_id": 7}

    model = ClassifierNetworkPallas(C, H, W, KH, KW, stride=1, dilation=1, key=kp)

    (linear_x, md1), (x_copy, md2), (none_a, none_b) = model(x, metadata)
    jax.block_until_ready(linear_x)
    jax.block_until_ready(x_copy)

    assert linear_x.shape == (B, 2)
    assert x_copy.shape == (B, C, H, W)
    assert md1 is metadata and md2 is metadata
    assert none_a is None and none_b is None

    ref = model.reference(x)
    assert jnp.allclose(linear_x, ref, rtol=1e-3, atol=1e-3), "mismatch vs reference"
    assert jnp.allclose(x_copy, x), "x_copy mismatch"

    print("KERNEL_OK")
</pallas_src>

<mosaic_0001>
module attributes {stable_mosaic.version = 11 : i64} {
  func.func @classifier_kernel(%arg0: i32, %arg1: memref<2x3x16x128xf32, #tpu.memory_space<vmem>>, %arg2: memref<2x14x128xf32, #tpu.memory_space<vmem>>, %arg3: memref<27xf32, #tpu.memory_space<smem>>, %arg4: memref<1xf32, #tpu.memory_space<smem>>, %arg5: memref<2xf32, #tpu.memory_space<smem>>, %arg6: memref<2x2xf32, #tpu.memory_space<vmem>>) attributes {dimension_semantics = [#tpu.dimension_semantics<parallel>], iteration_bounds = array<i64: 1>, scalar_prefetch = 0 : i64, scratch_operands = 0 : i64, tpu.core_type = #tpu.core_type<tc>, window_params = [{transform_indices = @transform_0, window_bounds = array<i64: 2, 3, 16, 128>}, {pipeline_mode = #tpu.pipeline_mode<synchronous>, transform_indices = @transform_1, window_bounds = array<i64: 2, 14, 128>}, {transform_indices = @transform_2, window_bounds = array<i64: 27>}, {transform_indices = @transform_3, window_bounds = array<i64: 1>}, {transform_indices = @transform_4, window_bounds = array<i64: 2>}, {transform_indices = @transform_5, window_bounds = array<i64: 2, 2>}]} {
    %c0 = arith.constant 0 : index
    %c0_0 = arith.constant 0 : index
    %c0_1 = arith.constant 0 : index
    %c0_2 = arith.constant 0 : index
    %0 = vector.load %arg1[%c0, %c0_0, %c0_1, %c0_2] : memref<2x3x16x128xf32, #tpu.memory_space<vmem>>, vector<2x1x16x128xf32>
    %1 = vector.shape_cast %0 : vector<2x1x16x128xf32> to vector<2x16x128xf32>
    %c0_3 = arith.constant 0 : index
    %2 = memref.load %arg3[%c0_3] : memref<27xf32, #tpu.memory_space<smem>>
    %3 = vector.broadcast %2 : f32 to vector<2x16x128xf32>
    %4 = arith.mulf %1, %3 : vector<2x16x128xf32>
    %c3 = arith.constant 3 : index
    %5 = memref.load %arg3[%c3] : memref<27xf32, #tpu.memory_space<smem>>
    %6 = vector.broadcast %5 : f32 to vector<2x16x128xf32>
    %7 = arith.mulf %1, %6 : vector<2x16x128xf32>
    %c6 = arith.constant 6 : index
    %8 = memref.load %arg3[%c6] : memref<27xf32, #tpu.memory_space<smem>>
    %9 = vector.broadcast %8 : f32 to vector<2x16x128xf32>
    %10 = arith.mulf %1, %9 : vector<2x16x128xf32>
    %c127_i32 = arith.constant 127 : i32
    %11 = tpu.dynamic_rotate %1 by %c127_i32 dim 2 : vector<2x16x128xf32>, i32 -> vector<2x16x128xf32>
    %c1 = arith.constant 1 : index
    %12 = memref.load %arg3[%c1] : memref<27xf32, #tpu.memory_space<smem>>
    %13 = vector.broadcast %12 : f32 to vector<2x16x128xf32>
    %14 = arith.mulf %11, %13 : vector<2x16x128xf32>
    %15 = arith.addf %4, %14 : vector<2x16x128xf32>
    %c4 = arith.constant 4 : index
    %16 = memref.load %arg3[%c4] : memref<27xf32, #tpu.memory_space<smem>>
    %17 = vector.broadcast %16 : f32 to vector<2x16x128xf32>
    %18 = arith.mulf %11, %17 : vector<2x16x128xf32>
    %19 = arith.addf %7, %18 : vector<2x16x128xf32>
    %c7 = arith.constant 7 : index
    %20 = memref.load %arg3[%c7] : memref<27xf32, #tpu.memory_space<smem>>
    %21 = vector.broadcast %20 : f32 to vector<2x16x128xf32>
    %22 = arith.mulf %11, %21 : vector<2x16x128xf32>
    %23 = arith.addf %10, %22 : vector<2x16x128xf32>
    %c126_i32 = arith.constant 126 : i32
    %24 = tpu.dynamic_rotate %1 by %c126_i32 dim 2 : vector<2x16x128xf32>, i32 -> vector<2x16x128xf32>
    %c2 = arith.constant 2 : index
    %25 = memref.load %arg3[%c2] : memref<27xf32, #tpu.memory_space<smem>>
    %26 = vector.broadcast %25 : f32 to vector<2x16x128xf32>
    %27 = arith.mulf %24, %26 : vector<2x16x128xf32>
    %28 = arith.addf %15, %27 : vector<2x16x128xf32>
    %c5 = arith.constant 5 : index
    %29 = memref.load %arg3[%c5] : memref<27xf32, #tpu.memory_space<smem>>
    %30 = vector.broadcast %29 : f32 to vector<2x16x128xf32>
    %31 = arith.mulf %24, %30 : vector<2x16x128xf32>
    %32 = arith.addf %19, %31 : vector<2x16x128xf32>
    %c8 = arith.constant 8 : index
    %33 = memref.load %arg3[%c8] : memref<27xf32, #tpu.memory_space<smem>>
    %34 = vector.broadcast %33 : f32 to vector<2x16x128xf32>
    %35 = arith.mulf %24, %34 : vector<2x16x128xf32>
    %36 = arith.addf %23, %35 : vector<2x16x128xf32>
    %c0_4 = arith.constant 0 : index
    %c1_5 = arith.constant 1 : index
    %c0_6 = arith.constant 0 : index
    %c0_7 = arith.constant 0 : index
    %37 = vector.load %arg1[%c0_4, %c1_5, %c0_6, %c0_7] : memref<2x3x16x128xf32, #tpu.memory_space<vmem>>, vector<2x1x16x128xf32>
    %38 = vector.shape_cast %37 : vector<2x1x16x128xf32> to vector<2x16x128xf32>
    %c9 = arith.constant 9 : index
    %39 = memref.load %arg3[%c9] : memref<27xf32, #tpu.memory_space<smem>>
    %40 = vector.broadcast %39 : f32 to vector<2x16x128xf32>
    %41 = arith.mulf %38, %40 : vector<2x16x128xf32>
    %42 = arith.addf %28, %41 : vector<2x16x128xf32>
    %c12 = arith.constant 12 : index
    %43 = memref.load %arg3[%c12] : memref<27xf32, #tpu.memory_space<smem>>
    %44 = vector.broadcast %43 : f32 to vector<2x16x128xf32>
    %45 = arith.mulf %38, %44 : vector<2x16x128xf32>
    %46 = arith.addf %32, %45 : vector<2x16x128xf32>
    %c15 = arith.constant 15 : index
    %47 = memref.load %arg3[%c15] : memref<27xf32, #tpu.memory_space<smem>>
    %48 = vector.broadcast %47 : f32 to vector<2x16x128xf32>
    %49 = arith.mulf %38, %48 : vector<2x16x128xf32>
    %50 = arith.addf %36, %49 : vector<2x16x128xf32>
    %c127_i32_8 = arith.constant 127 : i32
    %51 = tpu.dynamic_rotate %38 by %c127_i32_8 dim 2 : vector<2x16x128xf32>, i32 -> vector<2x16x128xf32>
    %c10 = arith.constant 10 : index
    %52 = memref.load %arg3[%c10] : memref<27xf32, #tpu.memory_space<smem>>
    %53 = vector.broadcast %52 : f32 to vector<2x16x128xf32>
    %54 = arith.mulf %51, %53 : vector<2x16x128xf32>
    %55 = arith.addf %42, %54 : vector<2x16x128xf32>
    %c13 = arith.constant 13 : index
    %56 = memref.load %arg3[%c13] : memref<27xf32, #tpu.memory_space<smem>>
    %57 = vector.broadcast %56 : f32 to vector<2x16x128xf32>
    %58 = arith.mulf %51, %57 : vector<2x16x128xf32>
    %59 = arith.addf %46, %58 : vector<2x16x128xf32>
    %c16 = arith.constant 16 : index
    %60 = memref.load %arg3[%c16] : memref<27xf32, #tpu.memory_space<smem>>
    %61 = vector.broadcast %60 : f32 to vector<2x16x128xf32>
    %62 = arith.mulf %51, %61 : vector<2x16x128xf32>
    %63 = arith.addf %50, %62 : vector<2x16x128xf32>
    %c126_i32_9 = arith.constant 126 : i32
    %64 = tpu.dynamic_rotate %38 by %c126_i32_9 dim 2 : vector<2x16x128xf32>, i32 -> vector<2x16x128xf32>
    %c11 = arith.constant 11 : index
    %65 = memref.load %arg3[%c11] : memref<27xf32, #tpu.memory_space<smem>>
    %66 = vector.broadcast %65 : f32 to vector<2x16x128xf32>
    %67 = arith.mulf %64, %66 : vector<2x16x128xf32>
    %68 = arith.addf %55, %67 : vector<2x16x128xf32>
    %c14 = arith.constant 14 : index
    %69 = memref.load %arg3[%c14] : memref<27xf32, #tpu.memory_space<smem>>
    %70 = vector.broadcast %69 : f32 to vector<2x16x128xf32>
    %71 = arith.mulf %64, %70 : vector<2x16x128xf32>
    %72 = arith.addf %59, %71 : vector<2x16x128xf32>
    %c17 = arith.constant 17 : index
    %73 = memref.load %arg3[%c17] : memref<27xf32, #tpu.memory_space<smem>>
    %74 = vector.broadcast %73 : f32 to vector<2x16x128xf32>
    %75 = arith.mulf %64, %74 : vector<2x16x128xf32>
    %76 = arith.addf %63, %75 : vector<2x16x128xf32>
    %c0_10 = arith.constant 0 : index
    %c2_11 = arith.constant 2 : index
    %c0_12 = arith.constant 0 : index
    %c0_13 = arith.constant 0 : index
    %77 = vector.load %arg1[%c0_10, %c2_11, %c0_12, %c0_13] : memref<2x3x16x128xf32, #tpu.memory_space<vmem>>, vector<2x1x16x128xf32>
    %78 = vector.shape_cast %77 : vector<2x1x16x128xf32> to vector<2x16x128xf32>
    %c18 = arith.constant 18 : index
    %79 = memref.load %arg3[%c18] : memref<27xf32, #tpu.memory_space<smem>>
    %80 = vector.broadcast %79 : f32 to vector<2x16x128xf32>
    %81 = arith.mulf %78, %80 : vector<2x16x128xf32>
    %82 = arith.addf %68, %81 : vector<2x16x128xf32>
    %c21 = arith.constant 21 : index
    %83 = memref.load %arg3[%c21] : memref<27xf32, #tpu.memory_space<smem>>
    %84 = vector.broadcast %83 : f32 to vector<2x16x128xf32>
    %85 = arith.mulf %78, %84 : vector<2x16x128xf32>
    %86 = arith.addf %72, %85 : vector<2x16x128xf32>
    %c24 = arith.constant 24 : index
    %87 = memref.load %arg3[%c24] : memref<27xf32, #tpu.memory_space<smem>>
    %88 = vector.broadcast %87 : f32 to vector<2x16x128xf32>
    %89 = arith.mulf %78, %88 : vector<2x16x128xf32>
    %90 = arith.addf %76, %89 : vector<2x16x128xf32>
    %c127_i32_14 = arith.constant 127 : i32
    %91 = tpu.dynamic_rotate %78 by %c127_i32_14 dim 2 : vector<2x16x128xf32>, i32 -> vector<2x16x128xf32>
    %c19 = arith.constant 19 : index
    %92 = memref.load %arg3[%c19] : memref<27xf32, #tpu.memory_space<smem>>
    %93 = vector.broadcast %92 : f32 to vector<2x16x128xf32>
    %94 = arith.mulf %91, %93 : vector<2x16x128xf32>
    %95 = arith.addf %82, %94 : vector<2x16x128xf32>
    %c22 = arith.constant 22 : index
    %96 = memref.load %arg3[%c22] : memref<27xf32, #tpu.memory_space<smem>>
    %97 = vector.broadcast %96 : f32 to vector<2x16x128xf32>
    %98 = arith.mulf %91, %97 : vector<2x16x128xf32>
    %99 = arith.addf %86, %98 : vector<2x16x128xf32>
    %c25 = arith.constant 25 : index
    %100 = memref.load %arg3[%c25] : memref<27xf32, #tpu.memory_space<smem>>
    %101 = vector.broadcast %100 : f32 to vector<2x16x128xf32>
    %102 = arith.mulf %91, %101 : vector<2x16x128xf32>
    %103 = arith.addf %90, %102 : vector<2x16x128xf32>
    %c126_i32_15 = arith.constant 126 : i32
    %104 = tpu.dynamic_rotate %78 by %c126_i32_15 dim 2 : vector<2x16x128xf32>, i32 -> vector<2x16x128xf32>
    %c20 = arith.constant 20 : index
    %105 = memref.load %arg3[%c20] : memref<27xf32, #tpu.memory_space<smem>>
    %106 = vector.broadcast %105 : f32 to vector<2x16x128xf32>
    %107 = arith.mulf %104, %106 : vector<2x16x128xf32>
    %108 = arith.addf %95, %107 : vector<2x16x128xf32>
    %c23 = arith.constant 23 : index
    %109 = memref.load %arg3[%c23] : memref<27xf32, #tpu.memory_space<smem>>
    %110 = vector.broadcast %109 : f32 to vector<2x16x128xf32>
    %111 = arith.mulf %104, %110 : vector<2x16x128xf32>
    %112 = arith.addf %99, %111 : vector<2x16x128xf32>
    %c26 = arith.constant 26 : index
    %113 = memref.load %arg3[%c26] : memref<27xf32, #tpu.memory_space<smem>>
    %114 = vector.broadcast %113 : f32 to vector<2x16x128xf32>
    %115 = arith.mulf %104, %114 : vector<2x16x128xf32>
    %116 = arith.addf %103, %115 : vector<2x16x128xf32>
    %117 = vector.extract_strided_slice %108 {offsets = [0, 0, 0], sizes = [2, 14, 128], strides = [1, 1, 1]} : vector<2x16x128xf32> to vector<2x14x128xf32>
    %118 = vector.extract_strided_slice %112 {offsets = [0, 1, 0], sizes = [2, 14, 128], strides = [1, 1, 1]} : vector<2x16x128xf32> to vector<2x14x128xf32>
    %119 = arith.addf %117, %118 : vector<2x14x128xf32>
    %120 = vector.extract_strided_slice %116 {offsets = [0, 2, 0], sizes = [2, 14, 128], strides = [1, 1, 1]} : vector<2x16x128xf32> to vector<2x14x128xf32>
    %121 = arith.addf %119, %120 : vector<2x14x128xf32>
    %c0_16 = arith.constant 0 : index
    %122 = memref.load %arg4[%c0_16] : memref<1xf32, #tpu.memory_space<smem>>
    %123 = vector.broadcast %122 : f32 to vector<2x14x128xf32>
    %124 = arith.addf %121, %123 : vector<2x14x128xf32>
    %cst = arith.constant 0.000000e+00 : f32
    %125 = vector.broadcast %cst : f32 to vector<2x14x128xf32>
    %126 = arith.maximumf %124, %125 : vector<2x14x128xf32>
    %c0_17 = arith.constant 0 : index
    %c0_18 = arith.constant 0 : index
    %c0_19 = arith.constant 0 : index
    %127 = vector.load %arg2[%c0_17, %c0_18, %c0_19] : memref<2x14x128xf32, #tpu.memory_space<vmem>>, vector<1x14x128xf32>
    %128 = vector.shape_cast %127 : vector<1x14x128xf32> to vector<14x128xf32>
    %129 = vector.shape_cast %128 : vector<14x128xf32> to vector<1x14x128xf32>
    %130 = vector.broadcast %129 : vector<1x14x128xf32> to vector<2x14x128xf32>
    %131 = arith.mulf %126, %130 : vector<2x14x128xf32>
    %cst_20 = arith.constant dense<0.000000e+00> : vector<2x14xf32>
    %132 = vector.multi_reduction <add>, %131, %cst_20 [2] : vector<2x14x128xf32> to vector<2x14xf32>
    %cst_21 = arith.constant dense<0.000000e+00> : vector<2xf32>
    %133 = vector.multi_reduction <add>, %132, %cst_21 [1] : vector<2x14xf32> to vector<2xf32>
    %134 = vector.shape_cast %133 : vector<2xf32> to vector<2x1xf32>
    %c0_22 = arith.constant 0 : index
    %135 = memref.load %arg5[%c0_22] : memref<2xf32, #tpu.memory_space<smem>>
    %136 = vector.broadcast %135 : f32 to vector<2x1xf32>
    %137 = arith.addf %134, %136 : vector<2x1xf32>
    %c1_23 = arith.constant 1 : index
    %c0_24 = arith.constant 0 : index
    %c0_25 = arith.constant 0 : index
    %138 = vector.load %arg2[%c1_23, %c0_24, %c0_25] : memref<2x14x128xf32, #tpu.memory_space<vmem>>, vector<1x14x128xf32>
    %139 = vector.shape_cast %138 : vector<1x14x128xf32> to vector<14x128xf32>
    %140 = vector.shape_cast %139 : vector<14x128xf32> to vector<1x14x128xf32>
    %141 = vector.broadcast %140 : vector<1x14x128xf32> to vector<2x14x128xf32>
    %142 = arith.mulf %126, %141 : vector<2x14x128xf32>
    %cst_26 = arith.constant dense<0.000000e+00> : vector<2x14xf32>
    %143 = vector.multi_reduction <add>, %142, %cst_26 [2] : vector<2x14x128xf32> to vector<2x14xf32>
    %cst_27 = arith.constant dense<0.000000e+00> : vector<2xf32>
    %144 = vector.multi_reduction <add>, %143, %cst_27 [1] : vector<2x14xf32> to vector<2xf32>
    %145 = vector.shape_cast %144 : vector<2xf32> to vector<2x1xf32>
    %c1_28 = arith.constant 1 : index
    %146 = memref.load %arg5[%c1_28] : memref<2xf32, #tpu.memory_space<smem>>
    %147 = vector.broadcast %146 : f32 to vector<2x1xf32>
    %148 = arith.addf %145, %147 : vector<2x1xf32>
    %149 = tpu.concatenate %137, %148 in 1 : vector<2x1xf32>, vector<2x1xf32> -> vector<2x2xf32>
    %c0_29 = arith.constant 0 : index
    %c0_30 = arith.constant 0 : index
    %150 = vector.load %arg6[%c0_29, %c0_30] : memref<2x2xf32, #tpu.memory_space<vmem>>, vector<2x2xf32>
    tpu.vector_store %arg6[%c0_29, %c0_30], %149 {strides = array<i32>} : memref<2x2xf32, #tpu.memory_space<vmem>>, vector<2x2xf32>,
    return
  }
  func.func @transform_0(%arg0: i32) -> (i32, i32, i32, i32) {
    %c0_i32 = arith.constant 0 : i32
    %c0_i32_0 = arith.constant 0 : i32
    %c0_i32_1 = arith.constant 0 : i32
    %c0_i32_2 = arith.constant 0 : i32
    return %arg0, %c0_i32, %c0_i32_0, %c0_i32_1 : i32, i32, i32, i32
  }
  func.func @transform_1(%arg0: i32) -> (i32, i32, i32) {
    %c0_i32 = arith.constant 0 : i32
    %c0_i32_0 = arith.constant 0 : i32
    %c0_i32_1 = arith.constant 0 : i32
    %c0_i32_2 = arith.constant 0 : i32
    return %c0_i32, %c0_i32_0, %c0_i32_1 : i32, i32, i32
  }
  func.func @transform_2(%arg0: i32) -> i32 {
    %c0_i32 = arith.constant 0 : i32
    %c0_i32_0 = arith.constant 0 : i32
    return %c0_i32 : i32
  }
  func.func @transform_3(%arg0: i32) -> i32 {
    %c0_i32 = arith.constant 0 : i32
    %c0_i32_0 = arith.constant 0 : i32
    return %c0_i32 : i32
  }
  func.func @transform_4(%arg0: i32) -> i32 {
    %c0_i32 = arith.constant 0 : i32
    %c0_i32_0 = arith.constant 0 : i32
    return %c0_i32 : i32
  }
  func.func @transform_5(%arg0: i32) -> (i32, i32) {
    %c0_i32 = arith.constant 0 : i32
    %c0_i32_0 = arith.constant 0 : i32
    return %arg0, %c0_i32 : i32, i32
  }
}

module attributes {stable_mosaic.version = 11 : i64} {
  func.func @classifier_kernel(%arg0: i32, %arg1: memref<2x3x16x128xf32, #tpu.memory_space<vmem>>, %arg2: memref<2x14x128xf32, #tpu.memory_space<vmem>>, %arg3: memref<27xf32, #tpu.memory_space<smem>>, %arg4: memref<1xf32, #tpu.memory_space<smem>>, %arg5: memref<2xf32, #tpu.memory_space<smem>>, %arg6: memref<2x2xf32, #tpu.memory_space<vmem>>) attributes {dimension_semantics = [#tpu.dimension_semantics<parallel>], iteration_bounds = array<i64: 1>, scalar_prefetch = 0 : i64, scratch_operands = 0 : i64, tpu.core_type = #tpu.core_type<tc>, window_params = [{transform_indices = @transform_0, window_bounds = array<i64: 2, 3, 16, 128>}, {pipeline_mode = #tpu.pipeline_mode<synchronous>, transform_indices = @transform_1, window_bounds = array<i64: 2, 14, 128>}, {transform_indices = @transform_2, window_bounds = array<i64: 27>}, {transform_indices = @transform_3, window_bounds = array<i64: 1>}, {transform_indices = @transform_4, window_bounds = array<i64: 2>}, {transform_indices = @transform_5, window_bounds = array<i64: 2, 2>}]} {
    %c0 = arith.constant 0 : index
    %c0_0 = arith.constant 0 : index
    %c0_1 = arith.constant 0 : index
    %c0_2 = arith.constant 0 : index
    %0 = vector.load %arg1[%c0, %c0_0, %c0_1, %c0_2] : memref<2x3x16x128xf32, #tpu.memory_space<vmem>>, vector<2x1x16x128xf32>
    %1 = vector.shape_cast %0 : vector<2x1x16x128xf32> to vector<2x16x128xf32>
    %c0_3 = arith.constant 0 : index
    %2 = memref.load %arg3[%c0_3] : memref<27xf32, #tpu.memory_space<smem>>
    %3 = vector.broadcast %2 : f32 to vector<2x16x128xf32>
    %4 = arith.mulf %1, %3 : vector<2x16x128xf32>
    %c3 = arith.constant 3 : index
    %5 = memref.load %arg3[%c3] : memref<27xf32, #tpu.memory_space<smem>>
    %6 = vector.broadcast %5 : f32 to vector<2x16x128xf32>
    %7 = arith.mulf %1, %6 : vector<2x16x128xf32>
    %c6 = arith.constant 6 : index
    %8 = memref.load %arg3[%c6] : memref<27xf32, #tpu.memory_space<smem>>
    %9 = vector.broadcast %8 : f32 to vector<2x16x128xf32>
    %10 = arith.mulf %1, %9 : vector<2x16x128xf32>
    %11 = vector.extract_strided_slice %1 {offsets = [0, 0, 1], sizes = [2, 16, 127], strides = [1, 1, 1]} : vector<2x16x128xf32> to vector<2x16x127xf32>
    %12 = vector.extract_strided_slice %1 {offsets = [0, 0, 0], sizes = [2, 16, 1], strides = [1, 1, 1]} : vector<2x16x128xf32> to vector<2x16x1xf32>
    %13 = tpu.concatenate %11, %12 in 2 : vector<2x16x127xf32>, vector<2x16x1xf32> -> vector<2x16x128xf32>
    %c1 = arith.constant 1 : index
    %14 = memref.load %arg3[%c1] : memref<27xf32, #tpu.memory_space<smem>>
    %15 = vector.broadcast %14 : f32 to vector<2x16x128xf32>
    %16 = arith.mulf %13, %15 : vector<2x16x128xf32>
    %17 = arith.addf %4, %16 : vector<2x16x128xf32>
    %c4 = arith.constant 4 : index
    %18 = memref.load %arg3[%c4] : memref<27xf32, #tpu.memory_space<smem>>
    %19 = vector.broadcast %18 : f32 to vector<2x16x128xf32>
    %20 = arith.mulf %13, %19 : vector<2x16x128xf32>
    %21 = arith.addf %7, %20 : vector<2x16x128xf32>
    %c7 = arith.constant 7 : index
    %22 = memref.load %arg3[%c7] : memref<27xf32, #tpu.memory_space<smem>>
    %23 = vector.broadcast %22 : f32 to vector<2x16x128xf32>
    %24 = arith.mulf %13, %23 : vector<2x16x128xf32>
    %25 = arith.addf %10, %24 : vector<2x16x128xf32>
    %26 = vector.extract_strided_slice %1 {offsets = [0, 0, 2], sizes = [2, 16, 126], strides = [1, 1, 1]} : vector<2x16x128xf32> to vector<2x16x126xf32>
    %27 = vector.extract_strided_slice %1 {offsets = [0, 0, 0], sizes = [2, 16, 2], strides = [1, 1, 1]} : vector<2x16x128xf32> to vector<2x16x2xf32>
    %28 = tpu.concatenate %26, %27 in 2 : vector<2x16x126xf32>, vector<2x16x2xf32> -> vector<2x16x128xf32>
    %c2 = arith.constant 2 : index
    %29 = memref.load %arg3[%c2] : memref<27xf32, #tpu.memory_space<smem>>
    %30 = vector.broadcast %29 : f32 to vector<2x16x128xf32>
    %31 = arith.mulf %28, %30 : vector<2x16x128xf32>
    %32 = arith.addf %17, %31 : vector<2x16x128xf32>
    %c5 = arith.constant 5 : index
    %33 = memref.load %arg3[%c5] : memref<27xf32, #tpu.memory_space<smem>>
    %34 = vector.broadcast %33 : f32 to vector<2x16x128xf32>
    %35 = arith.mulf %28, %34 : vector<2x16x128xf32>
    %36 = arith.addf %21, %35 : vector<2x16x128xf32>
    %c8 = arith.constant 8 : index
    %37 = memref.load %arg3[%c8] : memref<27xf32, #tpu.memory_space<smem>>
    %38 = vector.broadcast %37 : f32 to vector<2x16x128xf32>
    %39 = arith.mulf %28, %38 : vector<2x16x128xf32>
    %40 = arith.addf %25, %39 : vector<2x16x128xf32>
    %c0_4 = arith.constant 0 : index
    %c1_5 = arith.constant 1 : index
    %c0_6 = arith.constant 0 : index
    %c0_7 = arith.constant 0 : index
    %41 = vector.load %arg1[%c0_4, %c1_5, %c0_6, %c0_7] : memref<2x3x16x128xf32, #tpu.memory_space<vmem>>, vector<2x1x16x128xf32>
    %42 = vector.shape_cast %41 : vector<2x1x16x128xf32> to vector<2x16x128xf32>
    %c9 = arith.constant 9 : index
    %43 = memref.load %arg3[%c9] : memref<27xf32, #tpu.memory_space<smem>>
    %44 = vector.broadcast %43 : f32 to vector<2x16x128xf32>
    %45 = arith.mulf %42, %44 : vector<2x16x128xf32>
    %46 = arith.addf %32, %45 : vector<2x16x128xf32>
    %c12 = arith.constant 12 : index
    %47 = memref.load %arg3[%c12] : memref<27xf32, #tpu.memory_space<smem>>
    %48 = vector.broadcast %47 : f32 to vector<2x16x128xf32>
    %49 = arith.mulf %42, %48 : vector<2x16x128xf32>
    %50 = arith.addf %36, %49 : vector<2x16x128xf32>
    %c15 = arith.constant 15 : index
    %51 = memref.load %arg3[%c15] : memref<27xf32, #tpu.memory_space<smem>>
    %52 = vector.broadcast %51 : f32 to vector<2x16x128xf32>
    %53 = arith.mulf %42, %52 : vector<2x16x128xf32>
    %54 = arith.addf %40, %53 : vector<2x16x128xf32>
    %55 = vector.extract_strided_slice %42 {offsets = [0, 0, 1], sizes = [2, 16, 127], strides = [1, 1, 1]} : vector<2x16x128xf32> to vector<2x16x127xf32>
    %56 = vector.extract_strided_slice %42 {offsets = [0, 0, 0], sizes = [2, 16, 1], strides = [1, 1, 1]} : vector<2x16x128xf32> to vector<2x16x1xf32>
    %57 = tpu.concatenate %55, %56 in 2 : vector<2x16x127xf32>, vector<2x16x1xf32> -> vector<2x16x128xf32>
    %c10 = arith.constant 10 : index
    %58 = memref.load %arg3[%c10] : memref<27xf32, #tpu.memory_space<smem>>
    %59 = vector.broadcast %58 : f32 to vector<2x16x128xf32>
    %60 = arith.mulf %57, %59 : vector<2x16x128xf32>
    %61 = arith.addf %46, %60 : vector<2x16x128xf32>
    %c13 = arith.constant 13 : index
    %62 = memref.load %arg3[%c13] : memref<27xf32, #tpu.memory_space<smem>>
    %63 = vector.broadcast %62 : f32 to vector<2x16x128xf32>
    %64 = arith.mulf %57, %63 : vector<2x16x128xf32>
    %65 = arith.addf %50, %64 : vector<2x16x128xf32>
    %c16 = arith.constant 16 : index
    %66 = memref.load %arg3[%c16] : memref<27xf32, #tpu.memory_space<smem>>
    %67 = vector.broadcast %66 : f32 to vector<2x16x128xf32>
    %68 = arith.mulf %57, %67 : vector<2x16x128xf32>
    %69 = arith.addf %54, %68 : vector<2x16x128xf32>
    %70 = vector.extract_strided_slice %42 {offsets = [0, 0, 2], sizes = [2, 16, 126], strides = [1, 1, 1]} : vector<2x16x128xf32> to vector<2x16x126xf32>
    %71 = vector.extract_strided_slice %42 {offsets = [0, 0, 0], sizes = [2, 16, 2], strides = [1, 1, 1]} : vector<2x16x128xf32> to vector<2x16x2xf32>
    %72 = tpu.concatenate %70, %71 in 2 : vector<2x16x126xf32>, vector<2x16x2xf32> -> vector<2x16x128xf32>
    %c11 = arith.constant 11 : index
    %73 = memref.load %arg3[%c11] : memref<27xf32, #tpu.memory_space<smem>>
    %74 = vector.broadcast %73 : f32 to vector<2x16x128xf32>
    %75 = arith.mulf %72, %74 : vector<2x16x128xf32>
    %76 = arith.addf %61, %75 : vector<2x16x128xf32>
    %c14 = arith.constant 14 : index
    %77 = memref.load %arg3[%c14] : memref<27xf32, #tpu.memory_space<smem>>
    %78 = vector.broadcast %77 : f32 to vector<2x16x128xf32>
    %79 = arith.mulf %72, %78 : vector<2x16x128xf32>
    %80 = arith.addf %65, %79 : vector<2x16x128xf32>
    %c17 = arith.constant 17 : index
    %81 = memref.load %arg3[%c17] : memref<27xf32, #tpu.memory_space<smem>>
    %82 = vector.broadcast %81 : f32 to vector<2x16x128xf32>
    %83 = arith.mulf %72, %82 : vector<2x16x128xf32>
    %84 = arith.addf %69, %83 : vector<2x16x128xf32>
    %c0_8 = arith.constant 0 : index
    %c2_9 = arith.constant 2 : index
    %c0_10 = arith.constant 0 : index
    %c0_11 = arith.constant 0 : index
    %85 = vector.load %arg1[%c0_8, %c2_9, %c0_10, %c0_11] : memref<2x3x16x128xf32, #tpu.memory_space<vmem>>, vector<2x1x16x128xf32>
    %86 = vector.shape_cast %85 : vector<2x1x16x128xf32> to vector<2x16x128xf32>
    %c18 = arith.constant 18 : index
    %87 = memref.load %arg3[%c18] : memref<27xf32, #tpu.memory_space<smem>>
    %88 = vector.broadcast %87 : f32 to vector<2x16x128xf32>
    %89 = arith.mulf %86, %88 : vector<2x16x128xf32>
    %90 = arith.addf %76, %89 : vector<2x16x128xf32>
    %c21 = arith.constant 21 : index
    %91 = memref.load %arg3[%c21] : memref<27xf32, #tpu.memory_space<smem>>
    %92 = vector.broadcast %91 : f32 to vector<2x16x128xf32>
    %93 = arith.mulf %86, %92 : vector<2x16x128xf32>
    %94 = arith.addf %80, %93 : vector<2x16x128xf32>
    %c24 = arith.constant 24 : index
    %95 = memref.load %arg3[%c24] : memref<27xf32, #tpu.memory_space<smem>>
    %96 = vector.broadcast %95 : f32 to vector<2x16x128xf32>
    %97 = arith.mulf %86, %96 : vector<2x16x128xf32>
    %98 = arith.addf %84, %97 : vector<2x16x128xf32>
    %99 = vector.extract_strided_slice %86 {offsets = [0, 0, 1], sizes = [2, 16, 127], strides = [1, 1, 1]} : vector<2x16x128xf32> to vector<2x16x127xf32>
    %100 = vector.extract_strided_slice %86 {offsets = [0, 0, 0], sizes = [2, 16, 1], strides = [1, 1, 1]} : vector<2x16x128xf32> to vector<2x16x1xf32>
    %101 = tpu.concatenate %99, %100 in 2 : vector<2x16x127xf32>, vector<2x16x1xf32> -> vector<2x16x128xf32>
    %c19 = arith.constant 19 : index
    %102 = memref.load %arg3[%c19] : memref<27xf32, #tpu.memory_space<smem>>
    %103 = vector.broadcast %102 : f32 to vector<2x16x128xf32>
    %104 = arith.mulf %101, %103 : vector<2x16x128xf32>
    %105 = arith.addf %90, %104 : vector<2x16x128xf32>
    %c22 = arith.constant 22 : index
    %106 = memref.load %arg3[%c22] : memref<27xf32, #tpu.memory_space<smem>>
    %107 = vector.broadcast %106 : f32 to vector<2x16x128xf32>
    %108 = arith.mulf %101, %107 : vector<2x16x128xf32>
    %109 = arith.addf %94, %108 : vector<2x16x128xf32>
    %c25 = arith.constant 25 : index
    %110 = memref.load %arg3[%c25] : memref<27xf32, #tpu.memory_space<smem>>
    %111 = vector.broadcast %110 : f32 to vector<2x16x128xf32>
    %112 = arith.mulf %101, %111 : vector<2x16x128xf32>
    %113 = arith.addf %98, %112 : vector<2x16x128xf32>
    %114 = vector.extract_strided_slice %86 {offsets = [0, 0, 2], sizes = [2, 16, 126], strides = [1, 1, 1]} : vector<2x16x128xf32> to vector<2x16x126xf32>
    %115 = vector.extract_strided_slice %86 {offsets = [0, 0, 0], sizes = [2, 16, 2], strides = [1, 1, 1]} : vector<2x16x128xf32> to vector<2x16x2xf32>
    %116 = tpu.concatenate %114, %115 in 2 : vector<2x16x126xf32>, vector<2x16x2xf32> -> vector<2x16x128xf32>
    %c20 = arith.constant 20 : index
    %117 = memref.load %arg3[%c20] : memref<27xf32, #tpu.memory_space<smem>>
    %118 = vector.broadcast %117 : f32 to vector<2x16x128xf32>
    %119 = arith.mulf %116, %118 : vector<2x16x128xf32>
    %120 = arith.addf %105, %119 : vector<2x16x128xf32>
    %c23 = arith.constant 23 : index
    %121 = memref.load %arg3[%c23] : memref<27xf32, #tpu.memory_space<smem>>
    %122 = vector.broadcast %121 : f32 to vector<2x16x128xf32>
    %123 = arith.mulf %116, %122 : vector<2x16x128xf32>
    %124 = arith.addf %109, %123 : vector<2x16x128xf32>
    %c26 = arith.constant 26 : index
    %125 = memref.load %arg3[%c26] : memref<27xf32, #tpu.memory_space<smem>>
    %126 = vector.broadcast %125 : f32 to vector<2x16x128xf32>
    %127 = arith.mulf %116, %126 : vector<2x16x128xf32>
    %128 = arith.addf %113, %127 : vector<2x16x128xf32>
    %129 = vector.extract_strided_slice %120 {offsets = [0, 0, 0], sizes = [2, 14, 128], strides = [1, 1, 1]} : vector<2x16x128xf32> to vector<2x14x128xf32>
    %130 = vector.extract_strided_slice %124 {offsets = [0, 1, 0], sizes = [2, 14, 128], strides = [1, 1, 1]} : vector<2x16x128xf32> to vector<2x14x128xf32>
    %131 = arith.addf %129, %130 : vector<2x14x128xf32>
    %132 = vector.extract_strided_slice %128 {offsets = [0, 2, 0], sizes = [2, 14, 128], strides = [1, 1, 1]} : vector<2x16x128xf32> to vector<2x14x128xf32>
    %133 = arith.addf %131, %132 : vector<2x14x128xf32>
    %c0_12 = arith.constant 0 : index
    %134 = memref.load %arg4[%c0_12] : memref<1xf32, #tpu.memory_space<smem>>
    %135 = vector.broadcast %134 : f32 to vector<2x14x128xf32>
    %136 = arith.addf %133, %135 : vector<2x14x128xf32>
    %cst = arith.constant 0.000000e+00 : f32
    %137 = vector.broadcast %cst : f32 to vector<2x14x128xf32>
    %138 = arith.maximumf %136, %137 : vector<2x14x128xf32>
    %c0_13 = arith.constant 0 : index
    %c0_14 = arith.constant 0 : index
    %c0_15 = arith.constant 0 : index
    %139 = vector.load %arg2[%c0_13, %c0_14, %c0_15] : memref<2x14x128xf32, #tpu.memory_space<vmem>>, vector<1x14x128xf32>
    %140 = vector.shape_cast %139 : vector<1x14x128xf32> to vector<14x128xf32>
    %141 = vector.shape_cast %140 : vector<14x128xf32> to vector<1x14x128xf32>
    %142 = vector.broadcast %141 : vector<1x14x128xf32> to vector<2x14x128xf32>
    %143 = arith.mulf %138, %142 : vector<2x14x128xf32>
    %cst_16 = arith.constant dense<0.000000e+00> : vector<2x14xf32>
    %144 = vector.multi_reduction <add>, %143, %cst_16 [2] : vector<2x14x128xf32> to vector<2x14xf32>
    %cst_17 = arith.constant dense<0.000000e+00> : vector<2xf32>
    %145 = vector.multi_reduction <add>, %144, %cst_17 [1] : vector<2x14xf32> to vector<2xf32>
    %146 = vector.shape_cast %145 : vector<2xf32> to vector<2x1xf32>
    %c0_18 = arith.constant 0 : index
    %147 = memref.load %arg5[%c0_18] : memref<2xf32, #tpu.memory_space<smem>>
    %148 = vector.broadcast %147 : f32 to vector<2x1xf32>
    %149 = arith.addf %146, %148 : vector<2x1xf32>
    %c1_19 = arith.constant 1 : index
    %c0_20 = arith.constant 0 : index
    %c0_21 = arith.constant 0 : index
    %150 = vector.load %arg2[%c1_19, %c0_20, %c0_21] : memref<2x14x128xf32, #tpu.memory_space<vmem>>, vector<1x14x128xf32>
    %151 = vector.shape_cast %150 : vector<1x14x128xf32> to vector<14x128xf32>
    %152 = vector.shape_cast %151 : vector<14x128xf32> to vector<1x14x128xf32>
    %153 = vector.broadcast %152 : vector<1x14x128xf32> to vector<2x14x128xf32>
    %154 = arith.mulf %138, %153 : vector<2x14x128xf32>
    %cst_22 = arith.constant dense<0.000000e+00> : vector<2x14xf32>
    %155 = vector.multi_reduction <add>, %154, %cst_22 [2] : vector<2x14x128xf32> to vector<2x14xf32>
    %cst_23 = arith.constant dense<0.000000e+00> : vector<2xf32>
    %156 = vector.multi_reduction <add>, %155, %cst_23 [1] : vector<2x14xf32> to vector<2xf32>
    %157 = vector.shape_cast %156 : vector<2xf32> to vector<2x1xf32>
    %c1_24 = arith.constant 1 : index
    %158 = memref.load %arg5[%c1_24] : memref<2xf32, #tpu.memory_space<smem>>
    %159 = vector.broadcast %158 : f32 to vector<2x1xf32>
    %160 = arith.addf %157, %159 : vector<2x1xf32>
    %161 = tpu.concatenate %149, %160 in 1 : vector<2x1xf32>, vector<2x1xf32> -> vector<2x2xf32>
    %c0_25 = arith.constant 0 : index
    %c0_26 = arith.constant 0 : index
    %162 = vector.load %arg6[%c0_25, %c0_26] : memref<2x2xf32, #tpu.memory_space<vmem>>, vector<2x2xf32>
    tpu.vector_store %arg6[%c0_25, %c0_26], %161 {strides = array<i32>} : memref<2x2xf32, #tpu.memory_space<vmem>>, vector<2x2xf32>,
    return
  }
  func.func @transform_0(%arg0: i32) -> (i32, i32, i32, i32) {
    %c0_i32 = arith.constant 0 : i32
    %c0_i32_0 = arith.constant 0 : i32
    %c0_i32_1 = arith.constant 0 : i32
    %c0_i32_2 = arith.constant 0 : i32
    return %arg0, %c0_i32, %c0_i32_0, %c0_i32_1 : i32, i32, i32, i32
  }
  func.func @transform_1(%arg0: i32) -> (i32, i32, i32) {
    %c0_i32 = arith.constant 0 : i32
    %c0_i32_0 = arith.constant 0 : i32
    %c0_i32_1 = arith.constant 0 : i32
    %c0_i32_2 = arith.constant 0 : i32
    return %c0_i32, %c0_i32_0, %c0_i32_1 : i32, i32, i32
  }
  func.func @transform_2(%arg0: i32) -> i32 {
    %c0_i32 = arith.constant 0 : i32
    %c0_i32_0 = arith.constant 0 : i32
    return %c0_i32 : i32
  }
  func.func @transform_3(%arg0: i32) -> i32 {
    %c0_i32 = arith.constant 0 : i32
    %c0_i32_0 = arith.constant 0 : i32
    return %c0_i32 : i32
  }
  func.func @transform_4(%arg0: i32) -> i32 {
    %c0_i32 = arith.constant 0 : i32
    %c0_i32_0 = arith.constant 0 : i32
    return %c0_i32 : i32
  }
  func.func @transform_5(%arg0: i32) -> (i32, i32) {
    %c0_i32 = arith.constant 0 : i32
    %c0_i32_0 = arith.constant 0 : i32
    return %arg0, %c0_i32 : i32, i32
  }
}

</mosaic_0001>

<llo_original>
// kernel: tpu_custom_call.1
$region0: #{tpu_custom_call.1}
  #allocation0 [shape = 'u32[]', space=smem, size = 0x4, offset = 0x4, fixed_abs, tag = 'smem constant byte address 0x4 - core index']
  #allocation1 [shape = 'u32[144,128]{1,0:T(1,128)}', space=vmem, size = 0x12000, scoped, tag = 'internal scratch']
  #allocation2 [shape = 'f32[1]{0:T(128)S(6)}', space=smem, size = 0x200, scoped, tag = 'scoped memory for tpu_custom_call.1']
  %s0 = inlined_call_operand.hbm [shape: f32[2,3,16,128], index: 0, kind: input, shape index: {}]
  %s1 = inlined_call_operand.vmem [shape: f32[2,14,128], index: 1, kind: input, shape index: {}]
  %s2 = inlined_call_operand.vmem [shape: f32[27], index: 2, kind: input, shape index: {}]
  %s3 = inlined_call_operand.<no memory space> [shape: f32[1], index: 3, kind: input, shape index: {}]
  %s4 = inlined_call_operand.vmem [shape: f32[2], index: 4, kind: input, shape index: {}]
  %s5 = inlined_call_operand.hbm [shape: f32[2,2], index: 5, kind: output, shape index: {}]
  %s6 = sld [smem:[#allocation0]]
  $region42: #{tpu_custom_call.1} parent=0
    _
  %s8 = ssub.s32 1, %s6
  %s9 = scalar_select 0, %s8, %s6
  %10 = sst [smem:[#allocation2]] %s3
  $region1: #{tpu_custom_call.1} parent=0
    #allocation3 [shape = 'u8[49152]{0}', space=vmem, size = 0xc000, scoped, tag = 'input window, operand 0, single buffered']
    #allocation4 [shape = 's32[1]{0}', space=sflag, size = 0x4, scoped, tag = 'scoped memory for tpu_custom_call.1']
    #allocation5 [shape = 's32[1]{0}', space=sflag, size = 0x4, scoped, tag = 'scoped memory for tpu_custom_call.1']
    #allocation6 [shape = 's32[1]{0}', space=sflag, size = 0x4, scoped, tag = 'scoped memory for tpu_custom_call.1']
    #allocation7 [shape = 'u8[512]{0}', space=smem, size = 0x200, scoped, tag = 'input window, operand 2, single buffered']
    #allocation8 [shape = 'u8[512]{0}', space=smem, size = 0x200, scoped, tag = 'input window, operand 4, single buffered']
    #allocation9 [shape = 's32[1]{0}', space=sflag, size = 0x4, scoped, tag = 'scoped memory for tpu_custom_call.1']
    #allocation10 [shape = 'u8[1024]{0}', space=vmem, size = 0x400, scoped, tag = 'output window, operand 0, single buffered']
    %11 = vsyncpa [#allocation4], 0
    %12 = vsyncpa [#allocation6], 0
    %13 = vsyncpa [#allocation9], 0
    %14 = vsyncpa [#allocation5], 0
    // Predicated region
    $region2: #{tpu_custom_call.1} parent=1 // pred_check
      _
    $region3: #{tpu_custom_call.1} parent=1 // pred_check_branch
      %16 = sbr.rel (0) target = $region5
    $region4: #{tpu_custom_call.1} parent=1 // pred_region
      %s18 = ssub.s32 1536, 1536
      %19 = vsyncadd [#allocation4], %s18
      %s20 = sshll.u32 [#allocation3], 4
      %s21 = int_to_ptr.vmem [resolvable:$true] %s20
      %26 = dma.hbm_to_vmem [thread:$0]  %s0, 1536, %s21, [#allocation4], 128, 128, 8
    $region5: #{tpu_custom_call.1} parent=1 // pred_fallthru
      _
    // Predicated region
    $region6: #{tpu_custom_call.1} parent=1 // pred_check
      _
    $region7: #{tpu_custom_call.1} parent=1 // pred_check_branch
      %28 = sbr.rel (0) target = $region9
    $region8: #{tpu_custom_call.1} parent=1 // pred_region
      _
    $region9: #{tpu_custom_call.1} parent=1 // pred_fallthru
      _
    // Predicated region
    $region10: #{tpu_custom_call.1} parent=1 // pred_check
      _
    $region11: #{tpu_custom_call.1} parent=1 // pred_check_branch
      %30 = sbr.rel (0) target = $region13
    $region12: #{tpu_custom_call.1} parent=1 // pred_region
      %s32 = ssub.s32 16, 16
      %33 = vsyncadd [#allocation6], %s32
      %s35 = sshll.u32 %s2, 4
      %s36 = int_to_ptr.vmem [resolvable:$true] %s35
      %38 = dma.vmem_to_smem %s36, 16, [#allocation7], [#allocation6]
    $region13: #{tpu_custom_call.1} parent=1 // pred_fallthru
      _
    // Predicated region
    $region14: #{tpu_custom_call.1} parent=1 // pred_check
      _
    $region15: #{tpu_custom_call.1} parent=1 // pred_check_branch
      %40 = sbr.rel (0) target = $region17
    $region16: #{tpu_custom_call.1} parent=1 // pred_region
      _
    $region17: #{tpu_custom_call.1} parent=1 // pred_fallthru
      _
    // Predicated region
    $region18: #{tpu_custom_call.1} parent=1 // pred_check
      _
    $region19: #{tpu_custom_call.1} parent=1 // pred_check_branch
      %42 = sbr.rel (0) target = $region21
    $region20: #{tpu_custom_call.1} parent=1 // pred_region
      %s44 = ssub.s32 16, 16
      %45 = vsyncadd [#allocation9], %s44
      %s47 = sshll.u32 %s4, 4
      %s48 = int_to_ptr.vmem [resolvable:$true] %s47
      %50 = dma.vmem_to_smem %s48, 16, [#allocation8], [#allocation9]
    $region21: #{tpu_custom_call.1} parent=1 // pred_fallthru
      _
    // Predicated region
    $region22: #{tpu_custom_call.1} parent=1 // pred_check
      _
    $region23: #{tpu_custom_call.1} parent=1 // pred_check_branch
      %52 = sbr.rel (0) target = $region25
    $region24: #{tpu_custom_call.1} parent=1 // pred_region
      %53 = dma.done [#allocation4], 1536
    $region25: #{tpu_custom_call.1} parent=1 // pred_fallthru
      _
    // Predicated region
    $region26: #{tpu_custom_call.1} parent=1 // pred_check
      _
    $region27: #{tpu_custom_call.1} parent=1 // pred_check_branch
      %55 = sbr.rel (0) target = $region29
    $region28: #{tpu_custom_call.1} parent=1 // pred_region
      %56 = dma.done [#allocation6], 16
    $region29: #{tpu_custom_call.1} parent=1 // pred_fallthru
      _
    // Predicated region
    $region30: #{tpu_custom_call.1} parent=1 // pred_check
      _
    $region31: #{tpu_custom_call.1} parent=1 // pred_check_branch
      %58 = sbr.rel (0) target = $region33
    $region32: #{tpu_custom_call.1} parent=1 // pred_region
      %59 = dma.done [#allocation9], 16
    $region33: #{tpu_custom_call.1} parent=1 // pred_fallthru
      _
    %60 = sfence
    %v61 = vld [vmem:[#allocation3] sm:$0xff]
    %v62 = vld [vmem:[#allocation3 + $0x8] sm:$0xff]
    %v63 = vld [vmem:[#allocation3 + $0x30] sm:$0xff]
    %v64 = vld [vmem:[#allocation3 + $0x38] sm:$0xff]
    %s65 = sld [smem:[#allocation7]]
    %v66 = vstv %s65
    %v67 = vmul.f32 %v61, %v66
    %v68 = vmul.f32 %v62, %v66
    %v69 = vmul.f32 %v63, %v66
    %v70 = vmul.f32 %v64, %v66
    %s71 = sld [smem:[#allocation7 + $0x3]]
    %v72 = vstv %s71
    %v73 = vmul.f32 %v61, %v72
    %v74 = vmul.f32 %v62, %v72
    %v75 = vmul.f32 %v63, %v72
    %v76 = vmul.f32 %v64, %v72
    %s77 = sld [smem:[#allocation7 + $0x6]]
    %v78 = vstv %s77
    %v79 = vmul.f32 %v61, %v78
    %v80 = vmul.f32 %v62, %v78
    %v81 = vmul.f32 %v63, %v78
    %v82 = vmul.f32 %v64, %v78
    %83 = vrot.lane.b32.xlu0 %v61, 127
    %v84 = vpop.permute.xlu0 %83
    %85 = vrot.lane.b32.xlu0 %v62, 127
    %v86 = vpop.permute.xlu0 %85
    %87 = vrot.lane.b32.xlu0 %v63, 127
    %v88 = vpop.permute.xlu0 %87
    %89 = vrot.lane.b32.xlu0 %v64, 127
    %v90 = vpop.permute.xlu0 %89
    %s91 = sld [smem:[#allocation7 + $0x1]]
    %v92 = vstv %s91
    %v93 = vmul.f32 %v84, %v92
    %v94 = vmul.f32 %v86, %v92
    %v95 = vmul.f32 %v88, %v92
    %v96 = vmul.f32 %v90, %v92
    %v97 = vadd.f32 %v67, %v93
    %v98 = vadd.f32 %v68, %v94
    %v99 = vadd.f32 %v69, %v95
    %v100 = vadd.f32 %v70, %v96
    %s101 = sld [smem:[#allocation7 + $0x4]]
    %v102 = vstv %s101
    %v103 = vmul.f32 %v84, %v102
    %v104 = vmul.f32 %v86, %v102
    %v105 = vmul.f32 %v88, %v102
    %v106 = vmul.f32 %v90, %v102
    %v107 = vadd.f32 %v73, %v103
    %v108 = vadd.f32 %v74, %v104
    %v109 = vadd.f32 %v75, %v105
    %v110 = vadd.f32 %v76, %v106
    %s111 = sld [smem:[#allocation7 + $0x7]]
    %v112 = vstv %s111
    %v113 = vmul.f32 %v84, %v112
    %v114 = vmul.f32 %v86, %v112
    %v115 = vmul.f32 %v88, %v112
    %v116 = vmul.f32 %v90, %v112
    %v117 = vadd.f32 %v79, %v113
    %v118 = vadd.f32 %v80, %v114
    %v119 = vadd.f32 %v81, %v115
    %v120 = vadd.f32 %v82, %v116
    %121 = vrot.lane.b32.xlu0 %v61, 126
    %v122 = vpop.permute.xlu0 %121
    %123 = vrot.lane.b32.xlu0 %v62, 126
    %v124 = vpop.permute.xlu0 %123
    %125 = vrot.lane.b32.xlu0 %v63, 126
    %v126 = vpop.permute.xlu0 %125
    %127 = vrot.lane.b32.xlu0 %v64, 126
    %v128 = vpop.permute.xlu0 %127
    %s129 = sld [smem:[#allocation7 + $0x2]]
    %v130 = vstv %s129
    %v131 = vmul.f32 %v122, %v130
    %v132 = vmul.f32 %v124, %v130
    %v133 = vmul.f32 %v126, %v130
    %v134 = vmul.f32 %v128, %v130
    %v135 = vadd.f32 %v97, %v131
    %v136 = vadd.f32 %v98, %v132
    %v137 = vadd.f32 %v99, %v133
    %v138 = vadd.f32 %v100, %v134
    %s139 = sld [smem:[#allocation7 + $0x5]]
    %v140 = vstv %s139
    %v141 = vmul.f32 %v122, %v140
    %v142 = vmul.f32 %v124, %v140
    %v143 = vmul.f32 %v126, %v140
    %v144 = vmul.f32 %v128, %v140
    %v145 = vadd.f32 %v107, %v141
    %v146 = vadd.f32 %v108, %v142
    %v147 = vadd.f32 %v109, %v143
    %v148 = vadd.f32 %v110, %v144
    %s149 = sld [smem:[#allocation7 + $0x8]]
    %v150 = vstv %s149
    %v151 = vmul.f32 %v122, %v150
    %v152 = vmul.f32 %v124, %v150
    %v153 = vmul.f32 %v126, %v150
    %v154 = vmul.f32 %v128, %v150
    %v155 = vadd.f32 %v117, %v151
    %v156 = vadd.f32 %v118, %v152
    %v157 = vadd.f32 %v119, %v153
    %v158 = vadd.f32 %v120, %v154
    %s159 = scalar_lea.vmem [#allocation3], 16
    %v160 = vld [vmem:[%s159] sm:$0xff]
    %v161 = vld [vmem:[%s159 + $0x8] sm:$0xff]
    %v162 = vld [vmem:[%s159 + $0x30] sm:$0xff]
    %v163 = vld [vmem:[%s159 + $0x38] sm:$0xff]
    %s164 = sld [smem:[#allocation7 + $0x9]]
    %v165 = vstv %s164
    %v166 = vmul.f32 %v160, %v165
    %v167 = vmul.f32 %v161, %v165
    %v168 = vmul.f32 %v162, %v165
    %v169 = vmul.f32 %v163, %v165
    %v170 = vadd.f32 %v135, %v166
    %v171 = vadd.f32 %v136, %v167
    %v172 = vadd.f32 %v137, %v168
    %v173 = vadd.f32 %v138, %v169
    %s174 = sld [smem:[#allocation7 + $0xc]]
    %v175 = vstv %s174
    %v176 = vmul.f32 %v160, %v175
    %v177 = vmul.f32 %v161, %v175
    %v178 = vmul.f32 %v162, %v175
    %v179 = vmul.f32 %v163, %v175
    %v180 = vadd.f32 %v145, %v176
    %v181 = vadd.f32 %v146, %v177
    %v182 = vadd.f32 %v147, %v178
    %v183 = vadd.f32 %v148, %v179
    %s184 = sld [smem:[#allocation7 + $0xf]]
    %v185 = vstv %s184
    %v186 = vmul.f32 %v160, %v185
    %v187 = vmul.f32 %v161, %v185
    %v188 = vmul.f32 %v162, %v185
    %v189 = vmul.f32 %v163, %v185
    %v190 = vadd.f32 %v155, %v186
    %v191 = vadd.f32 %v156, %v187
    %v192 = vadd.f32 %v157, %v188
    %v193 = vadd.f32 %v158, %v189
    %194 = vrot.lane.b32.xlu0 %v160, 127
    %v195 = vpop.permute.xlu0 %194
    %196 = vrot.lane.b32.xlu0 %v161, 127
    %v197 = vpop.permute.xlu0 %196
    %198 = vrot.lane.b32.xlu0 %v162, 127
    %v199 = vpop.permute.xlu0 %198
    %200 = vrot.lane.b32.xlu0 %v163, 127
    %v201 = vpop.permute.xlu0 %200
    %s202 = sld [smem:[#allocation7 + $0xa]]
    %v203 = vstv %s202
    %v204 = vmul.f32 %v195, %v203
    %v205 = vmul.f32 %v197, %v203
    %v206 = vmul.f32 %v199, %v203
    %v207 = vmul.f32 %v201, %v203
    %v208 = vadd.f32 %v170, %v204
    %v209 = vadd.f32 %v171, %v205
    %v210 = vadd.f32 %v172, %v206
    %v211 = vadd.f32 %v173, %v207
    %s212 = sld [smem:[#allocation7 + $0xd]]
    %v213 = vstv %s212
    %v214 = vmul.f32 %v195, %v213
    %v215 = vmul.f32 %v197, %v213
    %v216 = vmul.f32 %v199, %v213
    %v217 = vmul.f32 %v201, %v213
    %v218 = vadd.f32 %v180, %v214
    %v219 = vadd.f32 %v181, %v215
    %v220 = vadd.f32 %v182, %v216
    %v221 = vadd.f32 %v183, %v217
    %s222 = sld [smem:[#allocation7 + $0x10]]
    %v223 = vstv %s222
    %v224 = vmul.f32 %v195, %v223
    %v225 = vmul.f32 %v197, %v223
    %v226 = vmul.f32 %v199, %v223
    %v227 = vmul.f32 %v201, %v223
    %v228 = vadd.f32 %v190, %v224
    %v229 = vadd.f32 %v191, %v225
    %v230 = vadd.f32 %v192, %v226
    %v231 = vadd.f32 %v193, %v227
    %232 = vrot.lane.b32.xlu0 %v160, 126
    %v233 = vpop.permute.xlu0 %232
    %234 = vrot.lane.b32.xlu0 %v161, 126
    %v235 = vpop.permute.xlu0 %234
    %236 = vrot.lane.b32.xlu0 %v162, 126
    %v237 = vpop.permute.xlu0 %236
    %238 = vrot.lane.b32.xlu0 %v163, 126
    %v239 = vpop.permute.xlu0 %238
    %s240 = sld [smem:[#allocation7 + $0xb]]
    %v241 = vstv %s240
    %v242 = vmul.f32 %v233, %v241
    %v243 = vmul.f32 %v235, %v241
    %v244 = vmul.f32 %v237, %v241
    %v245 = vmul.f32 %v239, %v241
    %v246 = vadd.f32 %v208, %v242
    %v247 = vadd.f32 %v209, %v243
    %v248 = vadd.f32 %v210, %v244
    %v249 = vadd.f32 %v211, %v245
    %s250 = sld [smem:[#allocation7 + $0xe]]
    %v251 = vstv %s250
    %v252 = vmul.f32 %v233, %v251
    %v253 = vmul.f32 %v235, %v251
    %v254 = vmul.f32 %v237, %v251
    %v255 = vmul.f32 %v239, %v251
    %v256 = vadd.f32 %v218, %v252
    %v257 = vadd.f32 %v219, %v253
    %v258 = vadd.f32 %v220, %v254
    %v259 = vadd.f32 %v221, %v255
    %s260 = sld [smem:[#allocation7 + $0x11]]
    %v261 = vstv %s260
    %v262 = vmul.f32 %v233, %v261
    %v263 = vmul.f32 %v235, %v261
    %v264 = vmul.f32 %v237, %v261
    %v265 = vmul.f32 %v239, %v261
    %v266 = vadd.f32 %v228, %v262
    %v267 = vadd.f32 %v229, %v263
    %v268 = vadd.f32 %v230, %v264
    %v269 = vadd.f32 %v231, %v265
    %s270 = scalar_lea.vmem [#allocation3], 32
    %v271 = vld [vmem:[%s270] sm:$0xff]
    %v272 = vld [vmem:[%s270 + $0x8] sm:$0xff]
    %v273 = vld [vmem:[%s270 + $0x30] sm:$0xff]
    %v274 = vld [vmem:[%s270 + $0x38] sm:$0xff]
    %s275 = sld [smem:[#allocation7 + $0x12]]
    %v276 = vstv %s275
    %v277 = vmul.f32 %v271, %v276
    %v278 = vmul.f32 %v272, %v276
    %v279 = vmul.f32 %v273, %v276
    %v280 = vmul.f32 %v274, %v276
    %v281 = vadd.f32 %v246, %v277
    %v282 = vadd.f32 %v247, %v278
    %v283 = vadd.f32 %v248, %v279
    %v284 = vadd.f32 %v249, %v280
    %s285 = sld [smem:[#allocation7 + $0x15]]
    %v286 = vstv %s285
    %v287 = vmul.f32 %v271, %v286
    %v288 = vmul.f32 %v272, %v286
    %v289 = vmul.f32 %v273, %v286
    %v290 = vmul.f32 %v274, %v286
    %v291 = vadd.f32 %v256, %v287
    %v292 = vadd.f32 %v257, %v288
    %v293 = vadd.f32 %v258, %v289
    %v294 = vadd.f32 %v259, %v290
    %s295 = sld [smem:[#allocation7 + $0x18]]
    %v296 = vstv %s295
    %v297 = vmul.f32 %v271, %v296
    %v298 = vmul.f32 %v272, %v296
    %v299 = vmul.f32 %v273, %v296
    %v300 = vmul.f32 %v274, %v296
    %v301 = vadd.f32 %v266, %v297
    %v302 = vadd.f32 %v267, %v298
    %v303 = vadd.f32 %v268, %v299
    %v304 = vadd.f32 %v269, %v300
    %305 = vrot.lane.b32.xlu0 %v271, 127
    %v306 = vpop.permute.xlu0 %305
    %307 = vrot.lane.b32.xlu0 %v272, 127
    %v308 = vpop.permute.xlu0 %307
    %309 = vrot.lane.b32.xlu0 %v273, 127
    %v310 = vpop.permute.xlu0 %309
    %311 = vrot.lane.b32.xlu0 %v274, 127
    %v312 = vpop.permute.xlu0 %311
    %s313 = sld [smem:[#allocation7 + $0x13]]
    %v314 = vstv %s313
    %v315 = vmul.f32 %v306, %v314
    %v316 = vmul.f32 %v308, %v314
    %v317 = vmul.f32 %v310, %v314
    %v318 = vmul.f32 %v312, %v314
    %v319 = vadd.f32 %v281, %v315
    %v320 = vadd.f32 %v282, %v316
    %v321 = vadd.f32 %v283, %v317
    %v322 = vadd.f32 %v284, %v318
    %s323 = sld [smem:[#allocation7 + $0x16]]
    %v324 = vstv %s323
    %v325 = vmul.f32 %v306, %v324
    %v326 = vmul.f32 %v308, %v324
    %v327 = vmul.f32 %v310, %v324
    %v328 = vmul.f32 %v312, %v324
    %v329 = vadd.f32 %v291, %v325
    %v330 = vadd.f32 %v292, %v326
    %v331 = vadd.f32 %v293, %v327
    %v332 = vadd.f32 %v294, %v328
    %s333 = sld [smem:[#allocation7 + $0x19]]
    %v334 = vstv %s333
    %v335 = vmul.f32 %v306, %v334
    %v336 = vmul.f32 %v308, %v334
    %v337 = vmul.f32 %v310, %v334
    %v338 = vmul.f32 %v312, %v334
    %v339 = vadd.f32 %v301, %v335
    %v340 = vadd.f32 %v302, %v336
    %v341 = vadd.f32 %v303, %v337
    %v342 = vadd.f32 %v304, %v338
    %343 = vrot.lane.b32.xlu0 %v271, 126
    %v344 = vpop.permute.xlu0 %343
    %345 = vrot.lane.b32.xlu0 %v272, 126
    %v346 = vpop.permute.xlu0 %345
    %347 = vrot.lane.b32.xlu0 %v273, 126
    %v348 = vpop.permute.xlu0 %347
    %349 = vrot.lane.b32.xlu0 %v274, 126
    %v350 = vpop.permute.xlu0 %349
    %s351 = sld [smem:[#allocation7 + $0x14]]
    %v352 = vstv %s351
    %v353 = vmul.f32 %v344, %v352
    %v354 = vmul.f32 %v346, %v352
    %v355 = vmul.f32 %v348, %v352
    %v356 = vmul.f32 %v350, %v352
    %v357 = vadd.f32 %v319, %v353
    %v358 = vadd.f32 %v320, %v354
    %v359 = vadd.f32 %v321, %v355
    %v360 = vadd.f32 %v322, %v356
    %s361 = sld [smem:[#allocation7 + $0x17]]
    %v362 = vstv %s361
    %v363 = vmul.f32 %v344, %v362
    %v364 = vmul.f32 %v346, %v362
    %v365 = vmul.f32 %v348, %v362
    %v366 = vmul.f32 %v350, %v362
    %v367 = vadd.f32 %v329, %v363
    %v368 = vadd.f32 %v330, %v364
    %v369 = vadd.f32 %v331, %v365
    %v370 = vadd.f32 %v332, %v366
    %s371 = sld [smem:[#allocation7 + $0x1a]]
    %v372 = vstv %s371
    %v373 = vmul.f32 %v344, %v372
    %v374 = vmul.f32 %v346, %v372
    %v375 = vmul.f32 %v348, %v372
    %v376 = vmul.f32 %v350, %v372
    %v377 = vadd.f32 %v339, %v373
    %v378 = vadd.f32 %v340, %v374
    %v379 = vadd.f32 %v341, %v375
    %v380 = vadd.f32 %v342, %v376
    %vm385 = vcmask 1046528
    %v386 = vrot.slane %v367, 1
    %v387 = vrot.slane %v368, 1
    %v388 = vsel %vm385, %v386, %v387
    %v389 = vrot.slane %v369, 1
    %v390 = vrot.slane %v370, 1
    %v391 = vsel %vm385, %v389, %v390
    %v396 = vadd.f32 %v357, %v388
    %v397 = vadd.f32 %v358, %v387
    %v398 = vadd.f32 %v359, %v391
    %v399 = vadd.f32 %v360, %v390
    %vm404 = vcmask 1045504
    %v405 = vrot.slane %v377, 2
    %v406 = vrot.slane %v378, 2
    %v407 = vsel %vm404, %v405, %v406
    %v408 = vrot.slane %v379, 2
    %v409 = vrot.slane %v380, 2
    %v410 = vsel %vm404, %v408, %v409
    %v415 = vadd.f32 %v396, %v407
    %v416 = vadd.f32 %v397, %v406
    %v417 = vadd.f32 %v398, %v410
    %v418 = vadd.f32 %v399, %v409
    %s419 = sld [smem:[#allocation2]]
    %v420 = vstv %s419
    %v421 = vadd.f32 %v415, %v420
    %v422 = vadd.f32 %v416, %v420
    %v423 = vadd.f32 %v417, %v420
    %v424 = vadd.f32 %v418, %v420
    %v425 = vmax.f32 %v421, 0.0
    %v426 = vmax.f32 %v422, 0.0
    %v427 = vmax.f32 %v423, 0.0
    %v428 = vmax.f32 %v424, 0.0
    %v429 = vld [vmem:[%s1] sm:$0xff]
    %v430 = vld [vmem:[%s1 + $0x8] sm:$0x3f]
    %v431 = vmul.f32 %v425, %v429
    %v432 = vmul.f32 %v426, %v430
    %v433 = vmul.f32 %v427, %v429
    %v434 = vmul.f32 %v428, %v430
    %435 = vadd.xlane.f32.xlu0 %v431
    %v436 = vpop.xlane.xlu0 %435
    %v437 = vsel %vm404, %v432, 0.0
    %438 = vadd.xlane.f32.xlu0 %v437
    %v439 = vpop.xlane.xlu0 %438
    %440 = vadd.xlane.f32.xlu0 %v433
    %v441 = vpop.xlane.xlu0 %440
    %v442 = vsel %vm404, %v434, 0.0
    %443 = vadd.xlane.f32.xlu0 %v442
    %v444 = vpop.xlane.xlu0 %443
    %v449 = vlaneseq
    %v450 = vand.u32 %v449, 127
    %v451 = vlaneseq
    %v452 = vshrl.u32 %v451, 7
    %v453 = vsub.s32 %v450, %v452
    %v454 = vrot.slane %v436, %v453
    %v455 = vadd.s32 %v450, 4294967288
    %v456 = vlaneseq
    %v457 = vshrl.u32 %v456, 7
    %v458 = vsub.s32 %v455, %v457
    %v459 = vrot.slane %v439, %v458
    %vm460 = vcmask 130112
    %v461 = vsel %vm460, %v459, %v454
    %v462 = vlaneseq
    %v463 = vshrl.u32 %v462, 7
    %v464 = vsub.s32 %v450, %v463
    %v465 = vrot.slane %v441, %v464
    %v466 = vlaneseq
    %v467 = vshrl.u32 %v466, 7
    %v468 = vsub.s32 %v455, %v467
    %v469 = vrot.slane %v444, %v468
    %v470 = vsel %vm460, %v469, %v465
    %vm471 = vcmask 1041409
    %v472 = vsel %vm471, %v470, %v461
    %vm474 = vcmask 107520
    %v475 = vsel %vm474, %v472, 0.0
    %476 = vadd.xlane.f32.xlu0 %v475
    %v477 = vpop.xlane.xlu0 %476
    %s478 = sld [smem:[#allocation8]]
    %v479 = vstv %s478
    %v480 = vadd.f32 %v477, %v479
    %s481 = scalar_lea.vmem %s1, 16
    %v482 = vld [vmem:[%s481] sm:$0xff]
    %v483 = vld [vmem:[%s481 + $0x8] sm:$0x3f]
    %v484 = vmul.f32 %v425, %v482
    %v485 = vmul.f32 %v426, %v483
    %v486 = vmul.f32 %v427, %v482
    %v487 = vmul.f32 %v428, %v483
    %488 = vadd.xlane.f32.xlu0 %v484
    %v489 = vpop.xlane.xlu0 %488
    %v490 = vsel %vm404, %v485, 0.0
    %491 = vadd.xlane.f32.xlu0 %v490
    %v492 = vpop.xlane.xlu0 %491
    %493 = vadd.xlane.f32.xlu0 %v486
    %v494 = vpop.xlane.xlu0 %493
    %v495 = vsel %vm404, %v487, 0.0
    %496 = vadd.xlane.f32.xlu0 %v495
    %v497 = vpop.xlane.xlu0 %496
    %v502 = vlaneseq
    %v503 = vshrl.u32 %v502, 7
    %v504 = vsub.s32 %v450, %v503
    %v505 = vrot.slane %v489, %v504
    %v506 = vlaneseq
    %v507 = vshrl.u32 %v506, 7
    %v508 = vsub.s32 %v455, %v507
    %v509 = vrot.slane %v492, %v508
    %v510 = vsel %vm460, %v509, %v505
    %v511 = vlaneseq
    %v512 = vshrl.u32 %v511, 7
    %v513 = vsub.s32 %v450, %v512
    %v514 = vrot.slane %v494, %v513
    %v515 = vlaneseq
    %v516 = vshrl.u32 %v515, 7
    %v517 = vsub.s32 %v455, %v516
    %v518 = vrot.slane %v497, %v517
    %v519 = vsel %vm460, %v518, %v514
    %v520 = vsel %vm471, %v519, %v510
    %v522 = vsel %vm474, %v520, 0.0
    %523 = vadd.xlane.f32.xlu0 %v522
    %v524 = vpop.xlane.xlu0 %523
    %s525 = sld [smem:[#allocation8 + $0x1]]
    %v526 = vstv %s525
    %v527 = vadd.f32 %v524, %v526
    %vm528 = vcmask 7168
    %v529 = vsel %vm528, %v480, %v527
    %vm530 = vcmask 9216
    %531 = vst.msk [vmem:[#allocation10] sm:$0x3] %vm530, %v529
    // Predicated region
    $region34: #{tpu_custom_call.1} parent=1 // pred_check
      _
    $region35: #{tpu_custom_call.1} parent=1 // pred_check_branch
      %533 = sbr.rel (0) target = $region37
    $region36: #{tpu_custom_call.1} parent=1 // pred_region
      %s535 = ssub.s32 32, 32
      %536 = vsyncadd [#allocation5], %s535
      %s538 = sshll.u32 [#allocation10], 4
      %s539 = int_to_ptr.vmem [resolvable:$true] %s538
      %541 = dma.vmem_to_hbm [thread:$0]  %s539, 32, %s5, [#allocation5]
    $region37: #{tpu_custom_call.1} parent=1 // pred_fallthru
      _
    // Predicated region
    $region38: #{tpu_custom_call.1} parent=1 // pred_check
      _
    $region39: #{tpu_custom_call.1} parent=1 // pred_check_branch
      %543 = sbr.rel (0) target = $region41
    $region40: #{tpu_custom_call.1} parent=1 // pred_region
      %544 = dma.done [#allocation5], 32
    $region41: #{tpu_custom_call.1} parent=1 // pred_fallthru
      _
    %545 = vsyncpa [#allocation4], 1
    %546 = vsyncpa [#allocation5], 1
    %547 = vsyncpa [#allocation6], 1
    %548 = vsyncpa [#allocation9], 1

// kernel: tpu_custom_call.1
$region0: #{tpu_custom_call.1}
  #allocation0 [shape = 'u32[]', space=smem, size = 0x4, offset = 0x4, fixed_abs, tag = 'smem constant byte address 0x4 - core index']
  #allocation1 [shape = 'u32[144,128]{1,0:T(1,128)}', space=vmem, size = 0x12000, scoped, tag = 'internal scratch']
  #allocation2 [shape = 'f32[1]{0:T(128)S(6)}', space=smem, size = 0x200, scoped, tag = 'scoped memory for tpu_custom_call.1']
  %s0 = inlined_call_operand.hbm [shape: f32[2,3,16,128], index: 0, kind: input, shape index: {}]
  %s1 = inlined_call_operand.vmem [shape: f32[2,14,128], index: 1, kind: input, shape index: {}]
  %s2 = inlined_call_operand.vmem [shape: f32[27], index: 2, kind: input, shape index: {}]
  %s3 = inlined_call_operand.<no memory space> [shape: f32[1], index: 3, kind: input, shape index: {}]
  %s4 = inlined_call_operand.vmem [shape: f32[2], index: 4, kind: input, shape index: {}]
  %s5 = inlined_call_operand.hbm [shape: f32[2,2], index: 5, kind: output, shape index: {}]
  %s6 = sld [smem:[#allocation0]]
  $region42: #{tpu_custom_call.1} parent=0
    _
  %s8 = ssub.s32 1, %s6
  %s9 = scalar_select 0, %s8, %s6
  %10 = sst [smem:[#allocation2]] %s3
  $region1: #{tpu_custom_call.1} parent=0
    #allocation3 [shape = 'u8[49152]{0}', space=vmem, size = 0xc000, scoped, tag = 'input window, operand 0, single buffered']
    #allocation4 [shape = 's32[1]{0}', space=sflag, size = 0x4, scoped, tag = 'scoped memory for tpu_custom_call.1']
    #allocation5 [shape = 's32[1]{0}', space=sflag, size = 0x4, scoped, tag = 'scoped memory for tpu_custom_call.1']
    #allocation6 [shape = 's32[1]{0}', space=sflag, size = 0x4, scoped, tag = 'scoped memory for tpu_custom_call.1']
    #allocation7 [shape = 'u8[512]{0}', space=smem, size = 0x200, scoped, tag = 'input window, operand 2, single buffered']
    #allocation8 [shape = 'u8[512]{0}', space=smem, size = 0x200, scoped, tag = 'input window, operand 4, single buffered']
    #allocation9 [shape = 's32[1]{0}', space=sflag, size = 0x4, scoped, tag = 'scoped memory for tpu_custom_call.1']
    #allocation10 [shape = 'u8[1024]{0}', space=vmem, size = 0x400, scoped, tag = 'output window, operand 0, single buffered']
    %11 = vsyncpa [#allocation4], 0
    %12 = vsyncpa [#allocation6], 0
    %13 = vsyncpa [#allocation9], 0
    %14 = vsyncpa [#allocation5], 0
    // Predicated region
    $region2: #{tpu_custom_call.1} parent=1 // pred_check
      _
    $region3: #{tpu_custom_call.1} parent=1 // pred_check_branch
      %16 = sbr.rel (0) target = $region5
    $region4: #{tpu_custom_call.1} parent=1 // pred_region
      %s18 = ssub.s32 1536, 1536
      %19 = vsyncadd [#allocation4], %s18
      %s20 = sshll.u32 [#allocation3], 4
      %s21 = int_to_ptr.vmem [resolvable:$true] %s20
      %26 = dma.hbm_to_vmem [thread:$0]  %s0, 1536, %s21, [#allocation4], 128, 128, 8
    $region5: #{tpu_custom_call.1} parent=1 // pred_fallthru
      _
    // Predicated region
    $region6: #{tpu_custom_call.1} parent=1 // pred_check
      _
    $region7: #{tpu_custom_call.1} parent=1 // pred_check_branch
      %28 = sbr.rel (0) target = $region9
    $region8: #{tpu_custom_call.1} parent=1 // pred_region
      _
    $region9: #{tpu_custom_call.1} parent=1 // pred_fallthru
      _
    // Predicated region
    $region10: #{tpu_custom_call.1} parent=1 // pred_check
      _
    $region11: #{tpu_custom_call.1} parent=1 // pred_check_branch
      %30 = sbr.rel (0) target = $region13
    $region12: #{tpu_custom_call.1} parent=1 // pred_region
      %s32 = ssub.s32 16, 16
      %33 = vsyncadd [#allocation6], %s32
      %s35 = sshll.u32 %s2, 4
      %s36 = int_to_ptr.vmem [resolvable:$true] %s35
      %38 = dma.vmem_to_smem %s36, 16, [#allocation7], [#allocation6]
    $region13: #{tpu_custom_call.1} parent=1 // pred_fallthru
      _
    // Predicated region
    $region14: #{tpu_custom_call.1} parent=1 // pred_check
      _
    $region15: #{tpu_custom_call.1} parent=1 // pred_check_branch
      %40 = sbr.rel (0) target = $region17
    $region16: #{tpu_custom_call.1} parent=1 // pred_region
      _
    $region17: #{tpu_custom_call.1} parent=1 // pred_fallthru
      _
    // Predicated region
    $region18: #{tpu_custom_call.1} parent=1 // pred_check
      _
    $region19: #{tpu_custom_call.1} parent=1 // pred_check_branch
      %42 = sbr.rel (0) target = $region21
    $region20: #{tpu_custom_call.1} parent=1 // pred_region
      %s44 = ssub.s32 16, 16
      %45 = vsyncadd [#allocation9], %s44
      %s47 = sshll.u32 %s4, 4
      %s48 = int_to_ptr.vmem [resolvable:$true] %s47
      %50 = dma.vmem_to_smem %s48, 16, [#allocation8], [#allocation9]
    $region21: #{tpu_custom_call.1} parent=1 // pred_fallthru
      _
    // Predicated region
    $region22: #{tpu_custom_call.1} parent=1 // pred_check
      _
    $region23: #{tpu_custom_call.1} parent=1 // pred_check_branch
      %52 = sbr.rel (0) target = $region25
    $region24: #{tpu_custom_call.1} parent=1 // pred_region
      %53 = dma.done [#allocation4], 1536
    $region25: #{tpu_custom_call.1} parent=1 // pred_fallthru
      _
    // Predicated region
    $region26: #{tpu_custom_call.1} parent=1 // pred_check
      _
    $region27: #{tpu_custom_call.1} parent=1 // pred_check_branch
      %55 = sbr.rel (0) target = $region29
    $region28: #{tpu_custom_call.1} parent=1 // pred_region
      %56 = dma.done [#allocation6], 16
    $region29: #{tpu_custom_call.1} parent=1 // pred_fallthru
      _
    // Predicated region
    $region30: #{tpu_custom_call.1} parent=1 // pred_check
      _
    $region31: #{tpu_custom_call.1} parent=1 // pred_check_branch
      %58 = sbr.rel (0) target = $region33
    $region32: #{tpu_custom_call.1} parent=1 // pred_region
      %59 = dma.done [#allocation9], 16
    $region33: #{tpu_custom_call.1} parent=1 // pred_fallthru
      _
    %60 = sfence
    %v61 = vld [vmem:[#allocation3] sm:$0xff]
    %v62 = vld [vmem:[#allocation3 + $0x8] sm:$0xff]
    %v63 = vld [vmem:[#allocation3 + $0x30] sm:$0xff]
    %v64 = vld [vmem:[#allocation3 + $0x38] sm:$0xff]
    %s65 = sld [smem:[#allocation7]]
    %v66 = vstv %s65
    %v67 = vmul.f32 %v61, %v66
    %v68 = vmul.f32 %v62, %v66
    %v69 = vmul.f32 %v63, %v66
    %v70 = vmul.f32 %v64, %v66
    %s71 = sld [smem:[#allocation7 + $0x3]]
    %v72 = vstv %s71
    %v73 = vmul.f32 %v61, %v72
    %v74 = vmul.f32 %v62, %v72
    %v75 = vmul.f32 %v63, %v72
    %v76 = vmul.f32 %v64, %v72
    %s77 = sld [smem:[#allocation7 + $0x6]]
    %v78 = vstv %s77
    %v79 = vmul.f32 %v61, %v78
    %v80 = vmul.f32 %v62, %v78
    %v81 = vmul.f32 %v63, %v78
    %v82 = vmul.f32 %v64, %v78
    %87 = vrot.lane.b32.xlu0 %v61, 127
    %v88 = vpop.permute.xlu0 %87
    %89 = vrot.lane.b32.xlu0 %v62, 127
    %v90 = vpop.permute.xlu0 %89
    %91 = vrot.lane.b32.xlu0 %v63, 127
    %v92 = vpop.permute.xlu0 %91
    %93 = vrot.lane.b32.xlu0 %v64, 127
    %v94 = vpop.permute.xlu0 %93
    %s99 = sld [smem:[#allocation7 + $0x1]]
    %v100 = vstv %s99
    %v101 = vmul.f32 %v88, %v100
    %v102 = vmul.f32 %v90, %v100
    %v103 = vmul.f32 %v92, %v100
    %v104 = vmul.f32 %v94, %v100
    %v105 = vadd.f32 %v67, %v101
    %v106 = vadd.f32 %v68, %v102
    %v107 = vadd.f32 %v69, %v103
    %v108 = vadd.f32 %v70, %v104
    %s109 = sld [smem:[#allocation7 + $0x4]]
    %v110 = vstv %s109
    %v111 = vmul.f32 %v88, %v110
    %v112 = vmul.f32 %v90, %v110
    %v113 = vmul.f32 %v92, %v110
    %v114 = vmul.f32 %v94, %v110
    %v115 = vadd.f32 %v73, %v111
    %v116 = vadd.f32 %v74, %v112
    %v117 = vadd.f32 %v75, %v113
    %v118 = vadd.f32 %v76, %v114
    %s119 = sld [smem:[#allocation7 + $0x7]]
    %v120 = vstv %s119
    %v121 = vmul.f32 %v88, %v120
    %v122 = vmul.f32 %v90, %v120
    %v123 = vmul.f32 %v92, %v120
    %v124 = vmul.f32 %v94, %v120
    %v125 = vadd.f32 %v79, %v121
    %v126 = vadd.f32 %v80, %v122
    %v127 = vadd.f32 %v81, %v123
    %v128 = vadd.f32 %v82, %v124
    %129 = vrot.lane.b32.xlu0 %v61, 126
    %v130 = vpop.permute.xlu0 %129
    %131 = vrot.lane.b32.xlu0 %v62, 126
    %v132 = vpop.permute.xlu0 %131
    %133 = vrot.lane.b32.xlu0 %v63, 126
    %v134 = vpop.permute.xlu0 %133
    %135 = vrot.lane.b32.xlu0 %v64, 126
    %v136 = vpop.permute.xlu0 %135
    %s141 = sld [smem:[#allocation7 + $0x2]]
    %v142 = vstv %s141
    %v143 = vmul.f32 %v130, %v142
    %v144 = vmul.f32 %v132, %v142
    %v145 = vmul.f32 %v134, %v142
    %v146 = vmul.f32 %v136, %v142
    %v147 = vadd.f32 %v105, %v143
    %v148 = vadd.f32 %v106, %v144
    %v149 = vadd.f32 %v107, %v145
    %v150 = vadd.f32 %v108, %v146
    %s151 = sld [smem:[#allocation7 + $0x5]]
    %v152 = vstv %s151
    %v153 = vmul.f32 %v130, %v152
    %v154 = vmul.f32 %v132, %v152
    %v155 = vmul.f32 %v134, %v152
    %v156 = vmul.f32 %v136, %v152
    %v157 = vadd.f32 %v115, %v153
    %v158 = vadd.f32 %v116, %v154
    %v159 = vadd.f32 %v117, %v155
    %v160 = vadd.f32 %v118, %v156
    %s161 = sld [smem:[#allocation7 + $0x8]]
    %v162 = vstv %s161
    %v163 = vmul.f32 %v130, %v162
    %v164 = vmul.f32 %v132, %v162
    %v165 = vmul.f32 %v134, %v162
    %v166 = vmul.f32 %v136, %v162
    %v167 = vadd.f32 %v125, %v163
    %v168 = vadd.f32 %v126, %v164
    %v169 = vadd.f32 %v127, %v165
    %v170 = vadd.f32 %v128, %v166
    %s171 = scalar_lea.vmem [#allocation3], 16
    %v172 = vld [vmem:[%s171] sm:$0xff]
    %v173 = vld [vmem:[%s171 + $0x8] sm:$0xff]
    %v174 = vld [vmem:[%s171 + $0x30] sm:$0xff]
    %v175 = vld [vmem:[%s171 + $0x38] sm:$0xff]
    %s176 = sld [smem:[#allocation7 + $0x9]]
    %v177 = vstv %s176
    %v178 = vmul.f32 %v172, %v177
    %v179 = vmul.f32 %v173, %v177
    %v180 = vmul.f32 %v174, %v177
    %v181 = vmul.f32 %v175, %v177
    %v182 = vadd.f32 %v147, %v178
    %v183 = vadd.f32 %v148, %v179
    %v184 = vadd.f32 %v149, %v180
    %v185 = vadd.f32 %v150, %v181
    %s186 = sld [smem:[#allocation7 + $0xc]]
    %v187 = vstv %s186
    %v188 = vmul.f32 %v172, %v187
    %v189 = vmul.f32 %v173, %v187
    %v190 = vmul.f32 %v174, %v187
    %v191 = vmul.f32 %v175, %v187
    %v192 = vadd.f32 %v157, %v188
    %v193 = vadd.f32 %v158, %v189
    %v194 = vadd.f32 %v159, %v190
    %v195 = vadd.f32 %v160, %v191
    %s196 = sld [smem:[#allocation7 + $0xf]]
    %v197 = vstv %s196
    %v198 = vmul.f32 %v172, %v197
    %v199 = vmul.f32 %v173, %v197
    %v200 = vmul.f32 %v174, %v197
    %v201 = vmul.f32 %v175, %v197
    %v202 = vadd.f32 %v167, %v198
    %v203 = vadd.f32 %v168, %v199
    %v204 = vadd.f32 %v169, %v200
    %v205 = vadd.f32 %v170, %v201
    %210 = vrot.lane.b32.xlu0 %v172, 127
    %v211 = vpop.permute.xlu0 %210
    %212 = vrot.lane.b32.xlu0 %v173, 127
    %v213 = vpop.permute.xlu0 %212
    %214 = vrot.lane.b32.xlu0 %v174, 127
    %v215 = vpop.permute.xlu0 %214
    %216 = vrot.lane.b32.xlu0 %v175, 127
    %v217 = vpop.permute.xlu0 %216
    %s222 = sld [smem:[#allocation7 + $0xa]]
    %v223 = vstv %s222
    %v224 = vmul.f32 %v211, %v223
    %v225 = vmul.f32 %v213, %v223
    %v226 = vmul.f32 %v215, %v223
    %v227 = vmul.f32 %v217, %v223
    %v228 = vadd.f32 %v182, %v224
    %v229 = vadd.f32 %v183, %v225
    %v230 = vadd.f32 %v184, %v226
    %v231 = vadd.f32 %v185, %v227
    %s232 = sld [smem:[#allocation7 + $0xd]]
    %v233 = vstv %s232
    %v234 = vmul.f32 %v211, %v233
    %v235 = vmul.f32 %v213, %v233
    %v236 = vmul.f32 %v215, %v233
    %v237 = vmul.f32 %v217, %v233
    %v238 = vadd.f32 %v192, %v234
    %v239 = vadd.f32 %v193, %v235
    %v240 = vadd.f32 %v194, %v236
    %v241 = vadd.f32 %v195, %v237
    %s242 = sld [smem:[#allocation7 + $0x10]]
    %v243 = vstv %s242
    %v244 = vmul.f32 %v211, %v243
    %v245 = vmul.f32 %v213, %v243
    %v246 = vmul.f32 %v215, %v243
    %v247 = vmul.f32 %v217, %v243
    %v248 = vadd.f32 %v202, %v244
    %v249 = vadd.f32 %v203, %v245
    %v250 = vadd.f32 %v204, %v246
    %v251 = vadd.f32 %v205, %v247
    %252 = vrot.lane.b32.xlu0 %v172, 126
    %v253 = vpop.permute.xlu0 %252
    %254 = vrot.lane.b32.xlu0 %v173, 126
    %v255 = vpop.permute.xlu0 %254
    %256 = vrot.lane.b32.xlu0 %v174, 126
    %v257 = vpop.permute.xlu0 %256
    %258 = vrot.lane.b32.xlu0 %v175, 126
    %v259 = vpop.permute.xlu0 %258
    %s264 = sld [smem:[#allocation7 + $0xb]]
    %v265 = vstv %s264
    %v266 = vmul.f32 %v253, %v265
    %v267 = vmul.f32 %v255, %v265
    %v268 = vmul.f32 %v257, %v265
    %v269 = vmul.f32 %v259, %v265
    %v270 = vadd.f32 %v228, %v266
    %v271 = vadd.f32 %v229, %v267
    %v272 = vadd.f32 %v230, %v268
    %v273 = vadd.f32 %v231, %v269
    %s274 = sld [smem:[#allocation7 + $0xe]]
    %v275 = vstv %s274
    %v276 = vmul.f32 %v253, %v275
    %v277 = vmul.f32 %v255, %v275
    %v278 = vmul.f32 %v257, %v275
    %v279 = vmul.f32 %v259, %v275
    %v280 = vadd.f32 %v238, %v276
    %v281 = vadd.f32 %v239, %v277
    %v282 = vadd.f32 %v240, %v278
    %v283 = vadd.f32 %v241, %v279
    %s284 = sld [smem:[#allocation7 + $0x11]]
    %v285 = vstv %s284
    %v286 = vmul.f32 %v253, %v285
    %v287 = vmul.f32 %v255, %v285
    %v288 = vmul.f32 %v257, %v285
    %v289 = vmul.f32 %v259, %v285
    %v290 = vadd.f32 %v248, %v286
    %v291 = vadd.f32 %v249, %v287
    %v292 = vadd.f32 %v250, %v288
    %v293 = vadd.f32 %v251, %v289
    %s294 = scalar_lea.vmem [#allocation3], 32
    %v295 = vld [vmem:[%s294] sm:$0xff]
    %v296 = vld [vmem:[%s294 + $0x8] sm:$0xff]
    %v297 = vld [vmem:[%s294 + $0x30] sm:$0xff]
    %v298 = vld [vmem:[%s294 + $0x38] sm:$0xff]
    %s299 = sld [smem:[#allocation7 + $0x12]]
    %v300 = vstv %s299
    %v301 = vmul.f32 %v295, %v300
    %v302 = vmul.f32 %v296, %v300
    %v303 = vmul.f32 %v297, %v300
    %v304 = vmul.f32 %v298, %v300
    %v305 = vadd.f32 %v270, %v301
    %v306 = vadd.f32 %v271, %v302
    %v307 = vadd.f32 %v272, %v303
    %v308 = vadd.f32 %v273, %v304
    %s309 = sld [smem:[#allocation7 + $0x15]]
    %v310 = vstv %s309
    %v311 = vmul.f32 %v295, %v310
    %v312 = vmul.f32 %v296, %v310
    %v313 = vmul.f32 %v297, %v310
    %v314 = vmul.f32 %v298, %v310
    %v315 = vadd.f32 %v280, %v311
    %v316 = vadd.f32 %v281, %v312
    %v317 = vadd.f32 %v282, %v313
    %v318 = vadd.f32 %v283, %v314
    %s319 = sld [smem:[#allocation7 + $0x18]]
    %v320 = vstv %s319
    %v321 = vmul.f32 %v295, %v320
    %v322 = vmul.f32 %v296, %v320
    %v323 = vmul.f32 %v297, %v320
    %v324 = vmul.f32 %v298, %v320
    %v325 = vadd.f32 %v290, %v321
    %v326 = vadd.f32 %v291, %v322
    %v327 = vadd.f32 %v292, %v323
    %v328 = vadd.f32 %v293, %v324
    %333 = vrot.lane.b32.xlu0 %v295, 127
    %v334 = vpop.permute.xlu0 %333
    %335 = vrot.lane.b32.xlu0 %v296, 127
    %v336 = vpop.permute.xlu0 %335
    %337 = vrot.lane.b32.xlu0 %v297, 127
    %v338 = vpop.permute.xlu0 %337
    %339 = vrot.lane.b32.xlu0 %v298, 127
    %v340 = vpop.permute.xlu0 %339
    %s345 = sld [smem:[#allocation7 + $0x13]]
    %v346 = vstv %s345
    %v347 = vmul.f32 %v334, %v346
    %v348 = vmul.f32 %v336, %v346
    %v349 = vmul.f32 %v338, %v346
    %v350 = vmul.f32 %v340, %v346
    %v351 = vadd.f32 %v305, %v347
    %v352 = vadd.f32 %v306, %v348
    %v353 = vadd.f32 %v307, %v349
    %v354 = vadd.f32 %v308, %v350
    %s355 = sld [smem:[#allocation7 + $0x16]]
    %v356 = vstv %s355
    %v357 = vmul.f32 %v334, %v356
    %v358 = vmul.f32 %v336, %v356
    %v359 = vmul.f32 %v338, %v356
    %v360 = vmul.f32 %v340, %v356
    %v361 = vadd.f32 %v315, %v357
    %v362 = vadd.f32 %v316, %v358
    %v363 = vadd.f32 %v317, %v359
    %v364 = vadd.f32 %v318, %v360
    %s365 = sld [smem:[#allocation7 + $0x19]]
    %v366 = vstv %s365
    %v367 = vmul.f32 %v334, %v366
    %v368 = vmul.f32 %v336, %v366
    %v369 = vmul.f32 %v338, %v366
    %v370 = vmul.f32 %v340, %v366
    %v371 = vadd.f32 %v325, %v367
    %v372 = vadd.f32 %v326, %v368
    %v373 = vadd.f32 %v327, %v369
    %v374 = vadd.f32 %v328, %v370
    %375 = vrot.lane.b32.xlu0 %v295, 126
    %v376 = vpop.permute.xlu0 %375
    %377 = vrot.lane.b32.xlu0 %v296, 126
    %v378 = vpop.permute.xlu0 %377
    %379 = vrot.lane.b32.xlu0 %v297, 126
    %v380 = vpop.permute.xlu0 %379
    %381 = vrot.lane.b32.xlu0 %v298, 126
    %v382 = vpop.permute.xlu0 %381
    %s387 = sld [smem:[#allocation7 + $0x14]]
    %v388 = vstv %s387
    %v389 = vmul.f32 %v376, %v388
    %v390 = vmul.f32 %v378, %v388
    %v391 = vmul.f32 %v380, %v388
    %v392 = vmul.f32 %v382, %v388
    %v393 = vadd.f32 %v351, %v389
    %v394 = vadd.f32 %v352, %v390
    %v395 = vadd.f32 %v353, %v391
    %v396 = vadd.f32 %v354, %v392
    %s397 = sld [smem:[#allocation7 + $0x17]]
    %v398 = vstv %s397
    %v399 = vmul.f32 %v376, %v398
    %v400 = vmul.f32 %v378, %v398
    %v401 = vmul.f32 %v380, %v398
    %v402 = vmul.f32 %v382, %v398
    %v403 = vadd.f32 %v361, %v399
    %v404 = vadd.f32 %v362, %v400
    %v405 = vadd.f32 %v363, %v401
    %v406 = vadd.f32 %v364, %v402
    %s407 = sld [smem:[#allocation7 + $0x1a]]
    %v408 = vstv %s407
    %v409 = vmul.f32 %v376, %v408
    %v410 = vmul.f32 %v378, %v408
    %v411 = vmul.f32 %v380, %v408
    %v412 = vmul.f32 %v382, %v408
    %v413 = vadd.f32 %v371, %v409
    %v414 = vadd.f32 %v372, %v410
    %v415 = vadd.f32 %v373, %v411
    %v416 = vadd.f32 %v374, %v412
    %vm421 = vcmask 1046528
    %v422 = vrot.slane %v403, 1
    %v423 = vrot.slane %v404, 1
    %v424 = vsel %vm421, %v422, %v423
    %v425 = vrot.slane %v405, 1
    %v426 = vrot.slane %v406, 1
    %v427 = vsel %vm421, %v425, %v426
    %v432 = vadd.f32 %v393, %v424
    %v433 = vadd.f32 %v394, %v423
    %v434 = vadd.f32 %v395, %v427
    %v435 = vadd.f32 %v396, %v426
    %vm440 = vcmask 1045504
    %v441 = vrot.slane %v413, 2
    %v442 = vrot.slane %v414, 2
    %v443 = vsel %vm440, %v441, %v442
    %v444 = vrot.slane %v415, 2
    %v445 = vrot.slane %v416, 2
    %v446 = vsel %vm440, %v444, %v445
    %v451 = vadd.f32 %v432, %v443
    %v452 = vadd.f32 %v433, %v442
    %v453 = vadd.f32 %v434, %v446
    %v454 = vadd.f32 %v435, %v445
    %s455 = sld [smem:[#allocation2]]
    %v456 = vstv %s455
    %v457 = vadd.f32 %v451, %v456
    %v458 = vadd.f32 %v452, %v456
    %v459 = vadd.f32 %v453, %v456
    %v460 = vadd.f32 %v454, %v456
    %v461 = vmax.f32 %v457, 0.0
    %v462 = vmax.f32 %v458, 0.0
    %v463 = vmax.f32 %v459, 0.0
    %v464 = vmax.f32 %v460, 0.0
    %v465 = vld [vmem:[%s1] sm:$0xff]
    %v466 = vld [vmem:[%s1 + $0x8] sm:$0x3f]
    %v467 = vmul.f32 %v461, %v465
    %v468 = vmul.f32 %v462, %v466
    %v469 = vmul.f32 %v463, %v465
    %v470 = vmul.f32 %v464, %v466
    %471 = vadd.xlane.f32.xlu0 %v467
    %v472 = vpop.xlane.xlu0 %471
    %v473 = vsel %vm440, %v468, 0.0
    %474 = vadd.xlane.f32.xlu0 %v473
    %v475 = vpop.xlane.xlu0 %474
    %476 = vadd.xlane.f32.xlu0 %v469
    %v477 = vpop.xlane.xlu0 %476
    %v478 = vsel %vm440, %v470, 0.0
    %479 = vadd.xlane.f32.xlu0 %v478
    %v480 = vpop.xlane.xlu0 %479
    %v485 = vlaneseq
    %v486 = vand.u32 %v485, 127
    %v487 = vlaneseq
    %v488 = vshrl.u32 %v487, 7
    %v489 = vsub.s32 %v486, %v488
    %v490 = vrot.slane %v472, %v489
    %v491 = vadd.s32 %v486, 4294967288
    %v492 = vlaneseq
    %v493 = vshrl.u32 %v492, 7
    %v494 = vsub.s32 %v491, %v493
    %v495 = vrot.slane %v475, %v494
    %vm496 = vcmask 130112
    %v497 = vsel %vm496, %v495, %v490
    %v498 = vlaneseq
    %v499 = vshrl.u32 %v498, 7
    %v500 = vsub.s32 %v486, %v499
    %v501 = vrot.slane %v477, %v500
    %v502 = vlaneseq
    %v503 = vshrl.u32 %v502, 7
    %v504 = vsub.s32 %v491, %v503
    %v505 = vrot.slane %v480, %v504
    %v506 = vsel %vm496, %v505, %v501
    %vm507 = vcmask 1041409
    %v508 = vsel %vm507, %v506, %v497
    %vm510 = vcmask 107520
    %v511 = vsel %vm510, %v508, 0.0
    %512 = vadd.xlane.f32.xlu0 %v511
    %v513 = vpop.xlane.xlu0 %512
    %s514 = sld [smem:[#allocation8]]
    %v515 = vstv %s514
    %v516 = vadd.f32 %v513, %v515
    %s517 = scalar_lea.vmem %s1, 16
    %v518 = vld [vmem:[%s517] sm:$0xff]
    %v519 = vld [vmem:[%s517 + $0x8] sm:$0x3f]
    %v520 = vmul.f32 %v461, %v518
    %v521 = vmul.f32 %v462, %v519
    %v522 = vmul.f32 %v463, %v518
    %v523 = vmul.f32 %v464, %v519
    %524 = vadd.xlane.f32.xlu0 %v520
    %v525 = vpop.xlane.xlu0 %524
    %v526 = vsel %vm440, %v521, 0.0
    %527 = vadd.xlane.f32.xlu0 %v526
    %v528 = vpop.xlane.xlu0 %527
    %529 = vadd.xlane.f32.xlu0 %v522
    %v530 = vpop.xlane.xlu0 %529
    %v531 = vsel %vm440, %v523, 0.0
    %532 = vadd.xlane.f32.xlu0 %v531
    %v533 = vpop.xlane.xlu0 %532
    %v538 = vlaneseq
    %v539 = vshrl.u32 %v538, 7
    %v540 = vsub.s32 %v486, %v539
    %v541 = vrot.slane %v525, %v540
    %v542 = vlaneseq
    %v543 = vshrl.u32 %v542, 7
    %v544 = vsub.s32 %v491, %v543
    %v545 = vrot.slane %v528, %v544
    %v546 = vsel %vm496, %v545, %v541
    %v547 = vlaneseq
    %v548 = vshrl.u32 %v547, 7
    %v549 = vsub.s32 %v486, %v548
    %v550 = vrot.slane %v530, %v549
    %v551 = vlaneseq
    %v552 = vshrl.u32 %v551, 7
    %v553 = vsub.s32 %v491, %v552
    %v554 = vrot.slane %v533, %v553
    %v555 = vsel %vm496, %v554, %v550
    %v556 = vsel %vm507, %v555, %v546
    %v558 = vsel %vm510, %v556, 0.0
    %559 = vadd.xlane.f32.xlu0 %v558
    %v560 = vpop.xlane.xlu0 %559
    %s561 = sld [smem:[#allocation8 + $0x1]]
    %v562 = vstv %s561
    %v563 = vadd.f32 %v560, %v562
    %vm564 = vcmask 7168
    %v565 = vsel %vm564, %v516, %v563
    %vm566 = vcmask 9216
    %567 = vst.msk [vmem:[#allocation10] sm:$0x3] %vm566, %v565
    // Predicated region
    $region34: #{tpu_custom_call.1} parent=1 // pred_check
      _
    $region35: #{tpu_custom_call.1} parent=1 // pred_check_branch
      %569 = sbr.rel (0) target = $region37
    $region36: #{tpu_custom_call.1} parent=1 // pred_region
      %s571 = ssub.s32 32, 32
      %572 = vsyncadd [#allocation5], %s571
      %s574 = sshll.u32 [#allocation10], 4
      %s575 = int_to_ptr.vmem [resolvable:$true] %s574
      %577 = dma.vmem_to_hbm [thread:$0]  %s575, 32, %s5, [#allocation5]
    $region37: #{tpu_custom_call.1} parent=1 // pred_fallthru
      _
    // Predicated region
    $region38: #{tpu_custom_call.1} parent=1 // pred_check
      _
    $region39: #{tpu_custom_call.1} parent=1 // pred_check_branch
      %579 = sbr.rel (0) target = $region41
    $region40: #{tpu_custom_call.1} parent=1 // pred_region
      %580 = dma.done [#allocation5], 32
    $region41: #{tpu_custom_call.1} parent=1 // pred_fallthru
      _
    %581 = vsyncpa [#allocation4], 1
    %582 = vsyncpa [#allocation5], 1
    %583 = vsyncpa [#allocation6], 1
    %584 = vsyncpa [#allocation9], 1

</llo_original>
